<compile_context>
chip_gen: v7x
topology: tpu7x:2x2x1
jax: 0.10.0
libtpu: 0.0.40
codegen_flags: <defaults>
</compile_context>

<pallas_src>
import functools

import jax
import jax.numpy as jnp
from jax.experimental import pallas as pl
from jax.experimental.pallas import tpu as pltpu


# --------------------------------------------------------------------------
# Conv2d 3x3, padding=1, stride=1, fused ReLU.  One grid step per batch item.
# 9 static taps accumulated in a register value; bf16 MXU, f32 accumulation.
# TODO(synk): at real VGG resolutions, restructure to a single im2col matmul
# (K = 9*Cin), fuse the 2x2 maxpool into the epilogue, and emit bf16
# activations to avoid HBM round trips; negligible at 16x16 inputs.
# --------------------------------------------------------------------------
def _conv3x3_relu_kernel(x_ref, w_ref, b_ref, o_ref):
    # x_ref: (1, H+2, W+2, Cin) zero-padded input tile (f32)
    # w_ref: (3, 3, Cin, Cout) bf16, b_ref: (1, Cout) f32
    # o_ref: (1, H, W, Cout) f32
    _, H, W, Cout = o_ref.shape
    Cin = x_ref.shape[3]
    acc = jnp.zeros((H * W, Cout), jnp.float32)
    for kh in range(3):                       # static unrolled 3x3 taps
        for kw in range(3):
            patch = x_ref[0, kh:kh + H, kw:kw + W, :].reshape(H * W, Cin)
            acc = acc + jnp.dot(patch.astype(jnp.bfloat16), w_ref[kh, kw],
                                preferred_element_type=jnp.float32)
    r = jnp.maximum(acc + b_ref[...], 0.0)    # bias + ReLU
    o_ref[...] = r.reshape(1, H, W, Cout)


def conv3x3_relu(x_nhwc, w, b):
    B, H, W, Cin = x_nhwc.shape
    Cout = w.shape[-1]
    xp = jnp.pad(x_nhwc, ((0, 0), (1, 1), (1, 1), (0, 0)))
    return pl.pallas_call(
        _conv3x3_relu_kernel,
        out_shape=jax.ShapeDtypeStruct((B, H, W, Cout), jnp.float32),
        grid=(B,),
        in_specs=[
            pl.BlockSpec((1, H + 2, W + 2, Cin), lambda i: (i, 0, 0, 0)),
            pl.BlockSpec((3, 3, Cin, Cout), lambda i: (0, 0, 0, 0)),
            pl.BlockSpec((1, Cout), lambda i: (0, 0)),
        ],
        out_specs=pl.BlockSpec((1, H, W, Cout), lambda i: (i, 0, 0, 0)),
        compiler_params=pltpu.CompilerParams(
            dimension_semantics=("parallel",)),
    )(xp, w, b.reshape(1, Cout))


# --------------------------------------------------------------------------
# MaxPool2d(kernel=2, stride=2).  The 4 window taps are extracted with
# strided slices in plain JAX (layout glue); the max reduction runs on-chip.
# TODO(synk): fuse this into the conv epilogue at real resolutions to remove
# the extra HBM round trip of the feature map (negligible at 16x16 here).
# --------------------------------------------------------------------------
def _max4_kernel(a_ref, b_ref, c_ref, d_ref, o_ref):
    o_ref[...] = jnp.maximum(jnp.maximum(a_ref[...], b_ref[...]),
                             jnp.maximum(c_ref[...], d_ref[...]))


def maxpool2x2(x_nhwc):
    B, H, W, C = x_nhwc.shape
    Ho, Wo = H // 2, W // 2
    a = x_nhwc[:, 0::2, 0::2, :]
    b = x_nhwc[:, 0::2, 1::2, :]
    c = x_nhwc[:, 1::2, 0::2, :]
    d = x_nhwc[:, 1::2, 1::2, :]
    spec = pl.BlockSpec((1, Ho, Wo, C), lambda i: (i, 0, 0, 0))
    return pl.pallas_call(
        _max4_kernel,
        out_shape=jax.ShapeDtypeStruct((B, Ho, Wo, C), x_nhwc.dtype),
        grid=(B,),
        in_specs=[spec, spec, spec, spec],
        out_specs=spec,
        compiler_params=pltpu.CompilerParams(
            dimension_semantics=("parallel",)),
    )(a, b, c, d)


# --------------------------------------------------------------------------
# Linear (y = (x @ Wq) * scale + b), optional fused ReLU.  Weights streamed
# as int8 with per-output-channel f32 scales; activations bf16; the MXU runs
# bf16 x bf16 with f32 accumulation directly into the resident output block.
# Tiled over (N, K); K is the reduction axis (last grid dim).
# TODO(synk): hide the first weight tile / inter-call gap with a cross-call
# prefetch (P10) or by fusing the three linears into one layer-gridded call.
# --------------------------------------------------------------------------
def _linear_kernel(x_ref, w_ref, s_ref, b_ref, o_ref, *, apply_relu):
    k = pl.program_id(1)

    @pl.when(k == 0)
    def _():
        o_ref[...] = jnp.zeros_like(o_ref)

    # int8 weight tile widened to bf16 (values in [-127,127] are exact in
    # bf16); per-channel scale factors out of the K-sum and is applied once
    # in the epilogue, so the accumulator stays a plain f32 MXU accumulator.
    o_ref[...] += jnp.dot(x_ref[...], w_ref[...].astype(jnp.bfloat16),
                          preferred_element_type=jnp.float32)

    @pl.when(k == pl.num_programs(1) - 1)
    def _():
        r = o_ref[...] * s_ref[...] + b_ref[...]
        if apply_relu:
            r = jnp.maximum(r, 0.0)
        o_ref[...] = r


def linear(x, w_q, scale, b, *, relu, tn, tk):
    M, K = x.shape
    N = w_q.shape[1]
    assert K % tk == 0 and N % tn == 0, (K, tk, N, tn)
    x = x.astype(jnp.bfloat16)          # cast once in XLA, not per k-step
    cost = pl.CostEstimate(
        flops=2 * M * K * N,
        transcendentals=0,
        bytes_accessed=K * N * 1 + M * K * 2 + M * N * 4 + 2 * N * 4)
    return pl.pallas_call(
        functools.partial(_linear_kernel, apply_relu=relu),
        out_shape=jax.ShapeDtypeStruct((M, N), jnp.float32),
        grid=(N // tn, K // tk),
        in_specs=[
            pl.BlockSpec((M, tk), lambda n, k: (0, k)),
            pl.BlockSpec((tk, tn), lambda n, k: (k, n)),
            pl.BlockSpec((1, tn), lambda n, k: (0, n)),
            pl.BlockSpec((1, tn), lambda n, k: (0, n)),
        ],
        out_specs=pl.BlockSpec((M, tn), lambda n, k: (0, n)),
        compiler_params=pltpu.CompilerParams(
            dimension_semantics=("parallel", "arbitrary"),
            vmem_limit_bytes=32 * 1024 * 1024),
        cost_estimate=cost,
    )(x, w_q, scale.reshape(1, N), b.reshape(1, N))


# --------------------------------------------------------------------------
# Parameter construction (deterministic, matches shapes implied by __init__).
# Conv weights bf16; classifier weights int8 + per-output-channel f32 scales;
# fc1 rows pre-permuted to NHWC flatten order; fc3 columns zero-padded to a
# multiple of 256 lanes (padding columns quantize to 0 / scale 1 / bias 0).
# --------------------------------------------------------------------------
def make_params(key, num_classes=1000):
    ks = jax.random.split(key, 5)

    def kaiming_conv(k, kh, kw, cin, cout):
        # kaiming_normal_(mode='fan_out', nonlinearity='relu'), stored bf16
        std = (2.0 / (cout * kh * kw)) ** 0.5
        w = jax.random.normal(k, (kh, kw, cin, cout), jnp.float32) * std
        return w.astype(jnp.bfloat16)

    def linear_w(k, fan_in, fan_out):
        # normal(0, 0.01), stored as (in, out) so y = x @ W
        return jax.random.normal(k, (fan_in, fan_out), jnp.float32) * 0.01

    def quant_int8(w):
        # symmetric per-output-channel int8 quantization
        amax = jnp.max(jnp.abs(w), axis=0)
        scale = jnp.where(amax > 0, amax / 127.0, 1.0).astype(jnp.float32)
        q = jnp.clip(jnp.round(w / scale[None, :]), -127, 127).astype(jnp.int8)
        return q, scale

    # fc1: PyTorch flattens NCHW -> rows ordered (c, h, w).  Our activations
    # are flattened NHWC -> (h, w, c); permute rows once at init so the
    # kernel consumes the NHWC flatten directly (no activation transpose).
    fc1 = linear_w(ks[2], 512 * 4 * 4, 4096)
    fc1 = fc1.reshape(512, 4, 4, 4096).transpose(1, 2, 0, 3)
    fc1 = fc1.reshape(512 * 4 * 4, 4096)

    fc2 = linear_w(ks[3], 4096, 4096)

    # fc3: pad N (num_classes) up to a multiple of 256 so output stores are
    # lane-dense and tn = n_pad // 2 always divides; padding columns are zero
    # and sliced off in the wrapper.
    n_pad = ((num_classes + 255) // 256) * 256
    fc3 = linear_w(ks[4], 4096, num_classes)
    fc3 = jnp.pad(fc3, ((0, 0), (0, n_pad - num_classes)))

    fc1_q, fc1_s = quant_int8(fc1)
    fc2_q, fc2_s = quant_int8(fc2)
    fc3_q, fc3_s = quant_int8(fc3)

    return {
        "conv1_w": kaiming_conv(ks[0], 3, 3, 3, 64),
        "conv1_b": jnp.zeros((64,), jnp.float32),
        "conv2_w": kaiming_conv(ks[1], 3, 3, 64, 512),
        "conv2_b": jnp.zeros((512,), jnp.float32),
        "fc1_w": fc1_q, "fc1_s": fc1_s, "fc1_b": jnp.zeros((4096,), jnp.float32),
        "fc2_w": fc2_q, "fc2_s": fc2_s, "fc2_b": jnp.zeros((4096,), jnp.float32),
        "fc3_w": fc3_q, "fc3_s": fc3_s, "fc3_b": jnp.zeros((n_pad,), jnp.float32),
    }


# --------------------------------------------------------------------------
# Full forward pass (eval mode: Dropout == identity).
# --------------------------------------------------------------------------
def vgg_forward(x_nchw, params, num_classes=1000):
    B = x_nchw.shape[0]
    x = jnp.transpose(x_nchw, (0, 2, 3, 1))                 # NCHW -> NHWC
    # features
    x = conv3x3_relu(x, params["conv1_w"], params["conv1_b"])
    x = maxpool2x2(x)
    x = conv3x3_relu(x, params["conv2_w"], params["conv2_b"])
    x = maxpool2x2(x)
    # flatten NHWC directly (fc1_w rows were permuted to match at init time)
    x = x.reshape(B, -1)
    # pad batch to 8 rows so the classifier's output blocks are sublane-dense
    MPAD = 8
    if B < MPAD:
        x = jnp.pad(x, ((0, MPAD - B), (0, 0)))
    # classifier: int8 weight stream, bf16 activations, f32 accumulation.
    x = linear(x, params["fc1_w"], params["fc1_s"], params["fc1_b"],
               relu=True, tn=2048, tk=4096)
    # TODO(synk): nn.Dropout omitted (identity / eval-mode semantics).
    x = linear(x, params["fc2_w"], params["fc2_s"], params["fc2_b"],
               relu=True, tn=2048, tk=4096)
    # fc3: N padded to a multiple of 256; tn = n_pad//2 so the parallel N
    # axis has 2 blocks (keeps both v7x TensorCores busy).
    n_pad = params["fc3_w"].shape[1]
    tn3 = max(n_pad // 2, 128)
    x = linear(x, params["fc3_w"], params["fc3_s"], params["fc3_b"],
               relu=False, tn=tn3, tk=4096)
    return x[:B, :num_classes]


if __name__ == "__main__":
    num_classes = 1000
    key = jax.random.PRNGKey(0)
    k_x, k_p = jax.random.split(key)

    # Small input consistent with the module: 16x16 RGB -> 512 x 4 x 4 features.
    x = jax.random.normal(k_x, (2, 3, 16, 16), jnp.float32)   # NCHW like PyTorch
    params = make_params(k_p, num_classes=num_classes)

    out = vgg_forward(x, params, num_classes=num_classes)
    out = jax.block_until_ready(out)

    assert out.shape == (2, num_classes), out.shape
    assert bool(jnp.all(jnp.isfinite(out)))
    print("KERNEL_OK")
</pallas_src>

<mosaic_0001>
module attributes {stable_mosaic.version = 11 : i64} {
  func.func @_conv3x3_relu_kernel(%arg0: i32, %arg1: memref<1x18x18x3xf32, #tpu.memory_space<vmem>>, %arg2: memref<3x3x3x64xbf16, #tpu.memory_space<vmem>>, %arg3: memref<1x64xf32, #tpu.memory_space<vmem>>, %arg4: memref<1x16x16x64xf32, #tpu.memory_space<vmem>>) attributes {dimension_semantics = [#tpu.dimension_semantics<parallel>], iteration_bounds = array<i64: 2>, scalar_prefetch = 0 : i64, scratch_operands = 0 : i64, tpu.core_type = #tpu.core_type<tc>, window_params = [{transform_indices = @transform_0, window_bounds = array<i64: 1, 18, 18, 3>}, {pipeline_mode = #tpu.pipeline_mode<synchronous>, transform_indices = @transform_1, window_bounds = array<i64: 3, 3, 3, 64>}, {pipeline_mode = #tpu.pipeline_mode<synchronous>, transform_indices = @transform_2, window_bounds = array<i64: 1, 64>}, {transform_indices = @transform_3, window_bounds = array<i64: 1, 16, 16, 64>}]} {
    %cst = arith.constant 0.000000e+00 : f32
    %0 = vector.broadcast %cst : f32 to vector<256x64xf32>
    %c0 = arith.constant 0 : index
    %c0_0 = arith.constant 0 : index
    %c0_1 = arith.constant 0 : index
    %c0_2 = arith.constant 0 : index
    %1 = vector.load %arg1[%c0, %c0_0, %c0_1, %c0_2] : memref<1x18x18x3xf32, #tpu.memory_space<vmem>>, vector<1x16x16x3xf32>
    %2 = vector.shape_cast %1 : vector<1x16x16x3xf32> to vector<16x16x3xf32>
    %3 = vector.shape_cast %2 : vector<16x16x3xf32> to vector<256x3xf32>
    %4 = arith.truncf %3 : vector<256x3xf32> to vector<256x3xbf16>
    %c0_3 = arith.constant 0 : index
    %c0_4 = arith.constant 0 : index
    %c0_5 = arith.constant 0 : index
    %c0_6 = arith.constant 0 : index
    %5 = vector.load %arg2[%c0_3, %c0_4, %c0_5, %c0_6] : memref<3x3x3x64xbf16, #tpu.memory_space<vmem>>, vector<1x1x3x64xbf16>
    %6 = vector.shape_cast %5 : vector<1x1x3x64xbf16> to vector<3x64xbf16>
    %cst_7 = arith.constant dense<0.000000e+00> : vector<256x64xf32>
    %7 = tpu.matmul %4, %6, %cst_7 {dimension_numbers = #tpu.dot_dimension_numbers<[1], [0], [0], [1], [0, 0, 1, 1], [], []>} : vector<256x3xbf16>, vector<3x64xbf16>, vector<256x64xf32> -> vector<256x64xf32>
    %8 = arith.addf %0, %7 : vector<256x64xf32>
    %c0_8 = arith.constant 0 : index
    %c0_9 = arith.constant 0 : index
    %c1 = arith.constant 1 : index
    %c0_10 = arith.constant 0 : index
    %9 = vector.load %arg1[%c0_8, %c0_9, %c1, %c0_10] : memref<1x18x18x3xf32, #tpu.memory_space<vmem>>, vector<1x16x16x3xf32>
    %10 = vector.shape_cast %9 : vector<1x16x16x3xf32> to vector<16x16x3xf32>
    %11 = vector.shape_cast %10 : vector<16x16x3xf32> to vector<256x3xf32>
    %12 = arith.truncf %11 : vector<256x3xf32> to vector<256x3xbf16>
    %c0_11 = arith.constant 0 : index
    %c1_12 = arith.constant 1 : index
    %c0_13 = arith.constant 0 : index
    %c0_14 = arith.constant 0 : index
    %13 = vector.load %arg2[%c0_11, %c1_12, %c0_13, %c0_14] : memref<3x3x3x64xbf16, #tpu.memory_space<vmem>>, vector<1x1x3x64xbf16>
    %14 = vector.shape_cast %13 : vector<1x1x3x64xbf16> to vector<3x64xbf16>
    %cst_15 = arith.constant dense<0.000000e+00> : vector<256x64xf32>
    %15 = tpu.matmul %12, %14, %cst_15 {dimension_numbers = #tpu.dot_dimension_numbers<[1], [0], [0], [1], [0, 0, 1, 1], [], []>} : vector<256x3xbf16>, vector<3x64xbf16>, vector<256x64xf32> -> vector<256x64xf32>
    %16 = arith.addf %8, %15 : vector<256x64xf32>
    %c0_16 = arith.constant 0 : index
    %c0_17 = arith.constant 0 : index
    %c2 = arith.constant 2 : index
    %c0_18 = arith.constant 0 : index
    %17 = vector.load %arg1[%c0_16, %c0_17, %c2, %c0_18] : memref<1x18x18x3xf32, #tpu.memory_space<vmem>>, vector<1x16x16x3xf32>
    %18 = vector.shape_cast %17 : vector<1x16x16x3xf32> to vector<16x16x3xf32>
    %19 = vector.shape_cast %18 : vector<16x16x3xf32> to vector<256x3xf32>
    %20 = arith.truncf %19 : vector<256x3xf32> to vector<256x3xbf16>
    %c0_19 = arith.constant 0 : index
    %c2_20 = arith.constant 2 : index
    %c0_21 = arith.constant 0 : index
    %c0_22 = arith.constant 0 : index
    %21 = vector.load %arg2[%c0_19, %c2_20, %c0_21, %c0_22] : memref<3x3x3x64xbf16, #tpu.memory_space<vmem>>, vector<1x1x3x64xbf16>
    %22 = vector.shape_cast %21 : vector<1x1x3x64xbf16> to vector<3x64xbf16>
    %cst_23 = arith.constant dense<0.000000e+00> : vector<256x64xf32>
    %23 = tpu.matmul %20, %22, %cst_23 {dimension_numbers = #tpu.dot_dimension_numbers<[1], [0], [0], [1], [0, 0, 1, 1], [], []>} : vector<256x3xbf16>, vector<3x64xbf16>, vector<256x64xf32> -> vector<256x64xf32>
    %24 = arith.addf %16, %23 : vector<256x64xf32>
    %c0_24 = arith.constant 0 : index
    %c1_25 = arith.constant 1 : index
    %c0_26 = arith.constant 0 : index
    %c0_27 = arith.constant 0 : index
    %25 = vector.load %arg1[%c0_24, %c1_25, %c0_26, %c0_27] : memref<1x18x18x3xf32, #tpu.memory_space<vmem>>, vector<1x16x16x3xf32>
    %26 = vector.shape_cast %25 : vector<1x16x16x3xf32> to vector<16x16x3xf32>
    %27 = vector.shape_cast %26 : vector<16x16x3xf32> to vector<256x3xf32>
    %28 = arith.truncf %27 : vector<256x3xf32> to vector<256x3xbf16>
    %c1_28 = arith.constant 1 : index
    %c0_29 = arith.constant 0 : index
    %c0_30 = arith.constant 0 : index
    %c0_31 = arith.constant 0 : index
    %29 = vector.load %arg2[%c1_28, %c0_29, %c0_30, %c0_31] : memref<3x3x3x64xbf16, #tpu.memory_space<vmem>>, vector<1x1x3x64xbf16>
    %30 = vector.shape_cast %29 : vector<1x1x3x64xbf16> to vector<3x64xbf16>
    %cst_32 = arith.constant dense<0.000000e+00> : vector<256x64xf32>
    %31 = tpu.matmul %28, %30, %cst_32 {dimension_numbers = #tpu.dot_dimension_numbers<[1], [0], [0], [1], [0, 0, 1, 1], [], []>} : vector<256x3xbf16>, vector<3x64xbf16>, vector<256x64xf32> -> vector<256x64xf32>
    %32 = arith.addf %24, %31 : vector<256x64xf32>
    %c0_33 = arith.constant 0 : index
    %c1_34 = arith.constant 1 : index
    %c1_35 = arith.constant 1 : index
    %c0_36 = arith.constant 0 : index
    %33 = vector.load %arg1[%c0_33, %c1_34, %c1_35, %c0_36] : memref<1x18x18x3xf32, #tpu.memory_space<vmem>>, vector<1x16x16x3xf32>
    %34 = vector.shape_cast %33 : vector<1x16x16x3xf32> to vector<16x16x3xf32>
    %35 = vector.shape_cast %34 : vector<16x16x3xf32> to vector<256x3xf32>
    %36 = arith.truncf %35 : vector<256x3xf32> to vector<256x3xbf16>
    %c1_37 = arith.constant 1 : index
    %c1_38 = arith.constant 1 : index
    %c0_39 = arith.constant 0 : index
    %c0_40 = arith.constant 0 : index
    %37 = vector.load %arg2[%c1_37, %c1_38, %c0_39, %c0_40] : memref<3x3x3x64xbf16, #tpu.memory_space<vmem>>, vector<1x1x3x64xbf16>
    %38 = vector.shape_cast %37 : vector<1x1x3x64xbf16> to vector<3x64xbf16>
    %cst_41 = arith.constant dense<0.000000e+00> : vector<256x64xf32>
    %39 = tpu.matmul %36, %38, %cst_41 {dimension_numbers = #tpu.dot_dimension_numbers<[1], [0], [0], [1], [0, 0, 1, 1], [], []>} : vector<256x3xbf16>, vector<3x64xbf16>, vector<256x64xf32> -> vector<256x64xf32>
    %40 = arith.addf %32, %39 : vector<256x64xf32>
    %c0_42 = arith.constant 0 : index
    %c1_43 = arith.constant 1 : index
    %c2_44 = arith.constant 2 : index
    %c0_45 = arith.constant 0 : index
    %41 = vector.load %arg1[%c0_42, %c1_43, %c2_44, %c0_45] : memref<1x18x18x3xf32, #tpu.memory_space<vmem>>, vector<1x16x16x3xf32>
    %42 = vector.shape_cast %41 : vector<1x16x16x3xf32> to vector<16x16x3xf32>
    %43 = vector.shape_cast %42 : vector<16x16x3xf32> to vector<256x3xf32>
    %44 = arith.truncf %43 : vector<256x3xf32> to vector<256x3xbf16>
    %c1_46 = arith.constant 1 : index
    %c2_47 = arith.constant 2 : index
    %c0_48 = arith.constant 0 : index
    %c0_49 = arith.constant 0 : index
    %45 = vector.load %arg2[%c1_46, %c2_47, %c0_48, %c0_49] : memref<3x3x3x64xbf16, #tpu.memory_space<vmem>>, vector<1x1x3x64xbf16>
    %46 = vector.shape_cast %45 : vector<1x1x3x64xbf16> to vector<3x64xbf16>
    %cst_50 = arith.constant dense<0.000000e+00> : vector<256x64xf32>
    %47 = tpu.matmul %44, %46, %cst_50 {dimension_numbers = #tpu.dot_dimension_numbers<[1], [0], [0], [1], [0, 0, 1, 1], [], []>} : vector<256x3xbf16>, vector<3x64xbf16>, vector<256x64xf32> -> vector<256x64xf32>
    %48 = arith.addf %40, %47 : vector<256x64xf32>
    %c0_51 = arith.constant 0 : index
    %c2_52 = arith.constant 2 : index
    %c0_53 = arith.constant 0 : index
    %c0_54 = arith.constant 0 : index
    %49 = vector.load %arg1[%c0_51, %c2_52, %c0_53, %c0_54] : memref<1x18x18x3xf32, #tpu.memory_space<vmem>>, vector<1x16x16x3xf32>
    %50 = vector.shape_cast %49 : vector<1x16x16x3xf32> to vector<16x16x3xf32>
    %51 = vector.shape_cast %50 : vector<16x16x3xf32> to vector<256x3xf32>
    %52 = arith.truncf %51 : vector<256x3xf32> to vector<256x3xbf16>
    %c2_55 = arith.constant 2 : index
    %c0_56 = arith.constant 0 : index
    %c0_57 = arith.constant 0 : index
    %c0_58 = arith.constant 0 : index
    %53 = vector.load %arg2[%c2_55, %c0_56, %c0_57, %c0_58] : memref<3x3x3x64xbf16, #tpu.memory_space<vmem>>, vector<1x1x3x64xbf16>
    %54 = vector.shape_cast %53 : vector<1x1x3x64xbf16> to vector<3x64xbf16>
    %cst_59 = arith.constant dense<0.000000e+00> : vector<256x64xf32>
    %55 = tpu.matmul %52, %54, %cst_59 {dimension_numbers = #tpu.dot_dimension_numbers<[1], [0], [0], [1], [0, 0, 1, 1], [], []>} : vector<256x3xbf16>, vector<3x64xbf16>, vector<256x64xf32> -> vector<256x64xf32>
    %56 = arith.addf %48, %55 : vector<256x64xf32>
    %c0_60 = arith.constant 0 : index
    %c2_61 = arith.constant 2 : index
    %c1_62 = arith.constant 1 : index
    %c0_63 = arith.constant 0 : index
    %57 = vector.load %arg1[%c0_60, %c2_61, %c1_62, %c0_63] : memref<1x18x18x3xf32, #tpu.memory_space<vmem>>, vector<1x16x16x3xf32>
    %58 = vector.shape_cast %57 : vector<1x16x16x3xf32> to vector<16x16x3xf32>
    %59 = vector.shape_cast %58 : vector<16x16x3xf32> to vector<256x3xf32>
    %60 = arith.truncf %59 : vector<256x3xf32> to vector<256x3xbf16>
    %c2_64 = arith.constant 2 : index
    %c1_65 = arith.constant 1 : index
    %c0_66 = arith.constant 0 : index
    %c0_67 = arith.constant 0 : index
    %61 = vector.load %arg2[%c2_64, %c1_65, %c0_66, %c0_67] : memref<3x3x3x64xbf16, #tpu.memory_space<vmem>>, vector<1x1x3x64xbf16>
    %62 = vector.shape_cast %61 : vector<1x1x3x64xbf16> to vector<3x64xbf16>
    %cst_68 = arith.constant dense<0.000000e+00> : vector<256x64xf32>
    %63 = tpu.matmul %60, %62, %cst_68 {dimension_numbers = #tpu.dot_dimension_numbers<[1], [0], [0], [1], [0, 0, 1, 1], [], []>} : vector<256x3xbf16>, vector<3x64xbf16>, vector<256x64xf32> -> vector<256x64xf32>
    %64 = arith.addf %56, %63 : vector<256x64xf32>
    %c0_69 = arith.constant 0 : index
    %c2_70 = arith.constant 2 : index
    %c2_71 = arith.constant 2 : index
    %c0_72 = arith.constant 0 : index
    %65 = vector.load %arg1[%c0_69, %c2_70, %c2_71, %c0_72] : memref<1x18x18x3xf32, #tpu.memory_space<vmem>>, vector<1x16x16x3xf32>
    %66 = vector.shape_cast %65 : vector<1x16x16x3xf32> to vector<16x16x3xf32>
    %67 = vector.shape_cast %66 : vector<16x16x3xf32> to vector<256x3xf32>
    %68 = arith.truncf %67 : vector<256x3xf32> to vector<256x3xbf16>
    %c2_73 = arith.constant 2 : index
    %c2_74 = arith.constant 2 : index
    %c0_75 = arith.constant 0 : index
    %c0_76 = arith.constant 0 : index
    %69 = vector.load %arg2[%c2_73, %c2_74, %c0_75, %c0_76] : memref<3x3x3x64xbf16, #tpu.memory_space<vmem>>, vector<1x1x3x64xbf16>
    %70 = vector.shape_cast %69 : vector<1x1x3x64xbf16> to vector<3x64xbf16>
    %cst_77 = arith.constant dense<0.000000e+00> : vector<256x64xf32>
    %71 = tpu.matmul %68, %70, %cst_77 {dimension_numbers = #tpu.dot_dimension_numbers<[1], [0], [0], [1], [0, 0, 1, 1], [], []>} : vector<256x3xbf16>, vector<3x64xbf16>, vector<256x64xf32> -> vector<256x64xf32>
    %72 = arith.addf %64, %71 : vector<256x64xf32>
    %c0_78 = arith.constant 0 : index
    %c0_79 = arith.constant 0 : index
    %73 = vector.load %arg3[%c0_78, %c0_79] : memref<1x64xf32, #tpu.memory_space<vmem>>, vector<1x64xf32>
    %74 = vector.broadcast %73 : vector<1x64xf32> to vector<256x64xf32>
    %75 = arith.addf %72, %74 : vector<256x64xf32>
    %cst_80 = arith.constant 0.000000e+00 : f32
    %76 = vector.broadcast %cst_80 : f32 to vector<256x64xf32>
    %77 = arith.maximumf %75, %76 : vector<256x64xf32>
    %78 = vector.shape_cast %77 : vector<256x64xf32> to vector<1x16x16x64xf32>
    %c0_81 = arith.constant 0 : index
    %c0_82 = arith.constant 0 : index
    %c0_83 = arith.constant 0 : index
    %c0_84 = arith.constant 0 : index
    %79 = vector.load %arg4[%c0_81, %c0_82, %c0_83, %c0_84] : memref<1x16x16x64xf32, #tpu.memory_space<vmem>>, vector<1x16x16x64xf32>
    tpu.vector_store %arg4[%c0_81, %c0_82, %c0_83, %c0_84], %78 {strides = array<i32>} : memref<1x16x16x64xf32, #tpu.memory_space<vmem>>, vector<1x16x16x64xf32>,
    return
  }
  func.func @transform_0(%arg0: i32) -> (i32, i32, i32, i32) {
    %c0_i32 = arith.constant 0 : i32
    %c0_i32_0 = arith.constant 0 : i32
    %c0_i32_1 = arith.constant 0 : i32
    %c0_i32_2 = arith.constant 0 : i32
    return %arg0, %c0_i32, %c0_i32_0, %c0_i32_1 : i32, i32, i32, i32
  }
  func.func @transform_1(%arg0: i32) -> (i32, i32, i32, i32) {
    %c0_i32 = arith.constant 0 : i32
    %c0_i32_0 = arith.constant 0 : i32
    %c0_i32_1 = arith.constant 0 : i32
    %c0_i32_2 = arith.constant 0 : i32
    %c0_i32_3 = arith.constant 0 : i32
    return %c0_i32, %c0_i32_0, %c0_i32_1, %c0_i32_2 : i32, i32, i32, i32
  }
  func.func @transform_2(%arg0: i32) -> (i32, i32) {
    %c0_i32 = arith.constant 0 : i32
    %c0_i32_0 = arith.constant 0 : i32
    %c0_i32_1 = arith.constant 0 : i32
    return %c0_i32, %c0_i32_0 : i32, i32
  }
  func.func @transform_3(%arg0: i32) -> (i32, i32, i32, i32) {
    %c0_i32 = arith.constant 0 : i32
    %c0_i32_0 = arith.constant 0 : i32
    %c0_i32_1 = arith.constant 0 : i32
    %c0_i32_2 = arith.constant 0 : i32
    return %arg0, %c0_i32, %c0_i32_0, %c0_i32_1 : i32, i32, i32, i32
  }
}

</mosaic_0001>

<llo_original>
// kernel: tpu_custom_call.1
$region0: #{tpu_custom_call.1}
  #allocation0 [shape = 'u32[]', space=smem, size = 0x4, offset = 0x4, fixed_abs, tag = 'smem constant byte address 0x4 - core index']
  #allocation1 [shape = 'u32[144,128]{1,0:T(1,128)}', space=vmem, size = 0x12000, scoped, tag = 'internal scratch']
  %s0 = inlined_call_operand.vmem [shape: f32[2,18,18,3], index: 0, kind: input, shape index: {}]
  %s1 = inlined_call_operand.vmem [shape: bf16[3,3,3,64], index: 1, kind: input, shape index: {}]
  %s2 = inlined_call_operand.vmem [shape: f32[1,64], index: 2, kind: input, shape index: {}]
  %s3 = inlined_call_operand.hbm [shape: f32[2,16,16,64], index: 3, kind: output, shape index: {}]
  %s4 = sld [smem:[#allocation0]]
  $region45: #{tpu_custom_call.1} parent=0
    _
  %s6 = ssub.s32 1, %s4
  %s7 = scalar_select 0, %s6, %s4
  $region1: #{tpu_custom_call.1} parent=0
    #allocation2 [shape = 'u8[262144]{0}', space=vmem, size = 0x40000, scoped, tag = 'output window, operand 0']
    #allocation3 [shape = 's32[2]{0}', space=sflag, size = 0x8, scoped, tag = 'scoped memory for tpu_custom_call.1']
    %8 = vsyncpa [#allocation3], 0
    %s9 = scalar_lea.sflag [#allocation3], 1
    %10 = vsyncpa %s9, 0
    loop: start=0, step=1, limit=4
    $region2: #{tpu_custom_call.1} parent=1 // loop_pre_header
      _
    $region3: #{tpu_custom_call.1} parent=1 // loop_header
      %s12 = sphi 0, %s16
      %p13 = scmp.ge.s32.totalorder %s12, 4
      %s22 = sphi 0, %s24
      %s25 = sphi 0, %s22
      %s26 = sphi 0, %s25
      %s42 = sphi 0, %s26
      %s46 = sphi 0, %s46
      %s48 = sphi 0, %s46
      %s49 = sphi 0, %s48
      %s63 = sphi 0, %s49
      %s67 = sphi 0, %s67
      %s69 = sphi 0, %s67
      %s70 = sphi 0, %s69
      %s84 = sphi 0, %s70
      %s90 = sphi 0, %s92
      %s93 = sphi 0, %s90
      %s94 = sphi 0, %s93
      %s110 = sphi 0, %s94
    $region4: #{tpu_custom_call.1} parent=1 // loop_header_branch
      %15 = sbr.rel (%p13) target = $region8
    $region5: #{tpu_custom_call.1} parent=1 // loop_body
      %s17 = ssub.s32 %s12, 1
      %s18 = ssub.s32 %s12, 2
      %s19 = sadd.s32 %s12, 1
      %s20 = ssub.s32 %s12, %s19
      %p21 = scmp.eq.s32.totalorder %s20, 0
      %s23 = sadd.s32 %s22, 1
      %s24 = scalar_select %p21, %s22, %s23
      %p27 = pneg %p21
      %p28 = scmp.eq.s32.totalorder %s12, 1
      %p29 = por %p27, %p28
      %p30 = scmp.ne.s32.totalorder %s22, %s25
      %p31 = scmp.eq.s32.totalorder %s12, 0
      %p32 = por %p30, %p31
      %p33 = scmp.ne.s32.totalorder %s22, %s25
      %p34 = scmp.eq.s32.totalorder %s17, 1
      %p35 = por %p33, %p34
      %p36 = scmp.ne.s32.totalorder %s25, %s26
      %p37 = scmp.eq.s32.totalorder %s17, 0
      %p38 = por %p36, %p37
      %p39 = scmp.ne.s32.totalorder %s25, %s26
      %p40 = scmp.eq.s32.totalorder %s18, 1
      %p41 = por %p39, %p40
      %p43 = scmp.ne.s32.totalorder %s26, %s42
      %p44 = scmp.eq.s32.totalorder %s18, 0
      %p45 = por %p43, %p44
      %s47 = sadd.s32 %s46, 1
      %p50 = scmp.eq.s32.totalorder %s12, 1
      %p51 = scmp.ne.s32.totalorder %s46, %s48
      %p52 = scmp.eq.s32.totalorder %s12, 0
      %p53 = por %p51, %p52
      %p54 = scmp.ne.s32.totalorder %s46, %s48
      %p55 = scmp.eq.s32.totalorder %s17, 1
      %p56 = por %p54, %p55
      %p57 = scmp.ne.s32.totalorder %s48, %s49
      %p58 = scmp.eq.s32.totalorder %s17, 0
      %p59 = por %p57, %p58
      %p60 = scmp.ne.s32.totalorder %s48, %s49
      %p61 = scmp.eq.s32.totalorder %s18, 1
      %p62 = por %p60, %p61
      %p64 = scmp.ne.s32.totalorder %s49, %s63
      %p65 = scmp.eq.s32.totalorder %s18, 0
      %p66 = por %p64, %p65
      %s68 = sadd.s32 %s67, 1
      %p71 = scmp.eq.s32.totalorder %s12, 1
      %p72 = scmp.ne.s32.totalorder %s67, %s69
      %p73 = scmp.eq.s32.totalorder %s12, 0
      %p74 = por %p72, %p73
      %p75 = scmp.ne.s32.totalorder %s67, %s69
      %p76 = scmp.eq.s32.totalorder %s17, 1
      %p77 = por %p75, %p76
      %p78 = scmp.ne.s32.totalorder %s69, %s70
      %p79 = scmp.eq.s32.totalorder %s17, 0
      %p80 = por %p78, %p79
      %p81 = scmp.ne.s32.totalorder %s69, %s70
      %p82 = scmp.eq.s32.totalorder %s18, 1
      %p83 = por %p81, %p82
      %p85 = scmp.ne.s32.totalorder %s70, %s84
      %p86 = scmp.eq.s32.totalorder %s18, 0
      %p87 = por %p85, %p86
      %s88 = ssub.s32 %s12, %s19
      %p89 = scmp.eq.s32.totalorder %s88, 0
      %s91 = sadd.s32 %s90, 1
      %s92 = scalar_select %p89, %s90, %s91
      %p95 = pneg %p89
      %p96 = scmp.eq.s32.totalorder %s12, 1
      %p97 = por %p95, %p96
      %p98 = scmp.ne.s32.totalorder %s90, %s93
      %p99 = scmp.eq.s32.totalorder %s12, 0
      %p100 = por %p98, %p99
      %p101 = scmp.ne.s32.totalorder %s90, %s93
      %p102 = scmp.eq.s32.totalorder %s17, 1
      %p103 = por %p101, %p102
      %p104 = scmp.ne.s32.totalorder %s93, %s94
      %p105 = scmp.eq.s32.totalorder %s17, 0
      %p106 = por %p104, %p105
      %p107 = scmp.ne.s32.totalorder %s93, %s94
      %p108 = scmp.eq.s32.totalorder %s18, 1
      %p109 = por %p107, %p108
      %p111 = scmp.ne.s32.totalorder %s94, %s110
      %p112 = scmp.eq.s32.totalorder %s18, 0
      %p113 = por %p111, %p112
      %p114 = scmp.le.s32.totalorder 1, %s12
      %p115 = scmp.lt.s32.totalorder %s12, 3
      %p116 = pnand %p114, %p115
      %p117 = pneg %p116
      // Predicated region
      $region9: #{tpu_custom_call.1} parent=5 // pred_check
        _
      $region10: #{tpu_custom_call.1} parent=5 // pred_check_branch
        %119 = sbr.rel (%p116) target = $region12
      $region11: #{tpu_custom_call.1} parent=5 // pred_region
        %s120 = ssub.s32 %s12, 1
        // Predicated region
        $region13: #{tpu_custom_call.1} parent=11 // pred_check
          %p121 = pneg %p59
        $region14: #{tpu_custom_call.1} parent=11 // pred_check_branch
          %123 = sbr.rel (%p121) target = $region16
        $region15: #{tpu_custom_call.1} parent=11 // pred_region
          _
        $region16: #{tpu_custom_call.1} parent=11 // pred_fallthru
          _
        // Predicated region
        $region17: #{tpu_custom_call.1} parent=11 // pred_check
          %p124 = pneg %p80
        $region18: #{tpu_custom_call.1} parent=11 // pred_check_branch
          %126 = sbr.rel (%p124) target = $region20
        $region19: #{tpu_custom_call.1} parent=11 // pred_region
          _
        $region20: #{tpu_custom_call.1} parent=11 // pred_fallthru
          _
      $region12: #{tpu_custom_call.1} parent=5 // pred_fallthru
        _
      %p127 = scmp.lt.s32.totalorder %s12, 2
      // Predicated region
      $region21: #{tpu_custom_call.1} parent=5 // pred_check
        %p128 = pneg %p127
      $region22: #{tpu_custom_call.1} parent=5 // pred_check_branch
        %130 = sbr.rel (%p128) target = $region24
      $region23: #{tpu_custom_call.1} parent=5 // pred_region
        // Predicated region
        $region25: #{tpu_custom_call.1} parent=23 // pred_check
          %p131 = pneg %p32
        $region26: #{tpu_custom_call.1} parent=23 // pred_check_branch
          %133 = sbr.rel (%p131) target = $region28
        $region27: #{tpu_custom_call.1} parent=23 // pred_region
          %p134 = scmp.lt.s32.totalorder %s12, 1
          %s135 = scalar_select %p134, %s12, 1
          %s136 = smul.addr %s135, 54
          %s137 = smul.addr %s136, 8
          %s138 = scalar_lea.vmem %s0, %s137
        $region28: #{tpu_custom_call.1} parent=23 // pred_fallthru
          _
      $region24: #{tpu_custom_call.1} parent=5 // pred_fallthru
        _
      %p139 = scmp.le.s32.totalorder 1, %s12
      %p140 = scmp.lt.s32.totalorder %s12, 3
      %p141 = pnand %p139, %p140
      %p142 = pneg %p141
      // Predicated region
      $region29: #{tpu_custom_call.1} parent=5 // pred_check
        _
      $region30: #{tpu_custom_call.1} parent=5 // pred_check_branch
        %144 = sbr.rel (%p141) target = $region32
      $region31: #{tpu_custom_call.1} parent=5 // pred_region
        %s145 = ssub.s32 %s12, 1
        %p146 = scmp.lt.s32.totalorder %s17, 1
        %s147 = scalar_select %p146, %s17, 1
        %s148 = smul.addr %s147, 54
        %s149 = smul.addr %s148, 8
        %s150 = scalar_lea.vmem %s0, %s149
        %p151 = pneg %p38
        %p152 = pneg %p35
        %p153 = pneg %p59
        %p154 = pneg %p56
        %p155 = pneg %p80
        %p156 = pneg %p77
        %p157 = pneg %p106
        %p158 = pneg %p103
        %s159 = sand.u32 %s93, 1
        %s160 = scalar_lea.sflag [#allocation3], %s159
        %s161 = sand.u32 %s93, 1
        %s162 = smul.addr %s161, 256
        %s163 = scalar_lea.vmem [#allocation2], %s162
        %p164 = scmp.lt.s32.totalorder %s17, 1
        %s165 = scalar_select %p164, %s17, 1
        %s166 = smul.addr %s165, 54
        %s167 = smul.addr %s166, 8
        %s168 = scalar_lea.vmem %s0, %s167
        %v170 = vld [vmem:[%s168] sm:$0xff]
        %v171 = vld [vmem:[%s168 + $0x8] sm:$0xff]
        %v172 = vld [vmem:[%s168 + $0x18] sm:$0xff]
        %v173 = vld [vmem:[%s168 + $0x20] sm:$0xff]
        %v174 = vld [vmem:[%s168 + $0x30] sm:$0xff]
        %v175 = vld [vmem:[%s168 + $0x38] sm:$0xff]
        %v176 = vld [vmem:[%s168 + $0x48] sm:$0xff]
        %v177 = vld [vmem:[%s168 + $0x50] sm:$0xff]
        %v178 = vld [vmem:[%s168 + $0x60] sm:$0xff]
        %v179 = vld [vmem:[%s168 + $0x68] sm:$0xff]
        %v180 = vld [vmem:[%s168 + $0x78] sm:$0xff]
        %v181 = vld [vmem:[%s168 + $0x80] sm:$0xff]
        %v182 = vld [vmem:[%s168 + $0x90] sm:$0xff]
        %v183 = vld [vmem:[%s168 + $0x98] sm:$0xff]
        %v184 = vld [vmem:[%s168 + $0xa8] sm:$0xff]
        %v185 = vld [vmem:[%s168 + $0xb0] sm:$0xff]
        %v186 = vld [vmem:[%s168 + $0xc0] sm:$0xff]
        %v187 = vld [vmem:[%s168 + $0xc8] sm:$0xff]
        %v188 = vld [vmem:[%s168 + $0xd8] sm:$0xff]
        %v189 = vld [vmem:[%s168 + $0xe0] sm:$0xff]
        %v190 = vld [vmem:[%s168 + $0xf0] sm:$0xff]
        %v191 = vld [vmem:[%s168 + $0xf8] sm:$0xff]
        %v192 = vld [vmem:[%s168 + $0x108] sm:$0xff]
        %v193 = vld [vmem:[%s168 + $0x110] sm:$0xff]
        %v194 = vld [vmem:[%s168 + $0x120] sm:$0xff]
        %v195 = vld [vmem:[%s168 + $0x128] sm:$0xff]
        %v196 = vld [vmem:[%s168 + $0x138] sm:$0xff]
        %v197 = vld [vmem:[%s168 + $0x140] sm:$0xff]
        %v198 = vld [vmem:[%s168 + $0x150] sm:$0xff]
        %v199 = vld [vmem:[%s168 + $0x158] sm:$0xff]
        %v200 = vld [vmem:[%s168 + $0x168] sm:$0xff]
        %v201 = vld [vmem:[%s168 + $0x170] sm:$0xff]
        %v202 = vpack.c.bf16 %v171, %v170
        %v203 = vpack.c.bf16 %v173, %v172
        %v204 = vpack.c.bf16 %v175, %v174
        %v205 = vpack.c.bf16 %v177, %v176
        %v206 = vpack.c.bf16 %v179, %v178
        %v207 = vpack.c.bf16 %v181, %v180
        %v208 = vpack.c.bf16 %v183, %v182
        %v209 = vpack.c.bf16 %v185, %v184
        %v210 = vpack.c.bf16 %v187, %v186
        %v211 = vpack.c.bf16 %v189, %v188
        %v212 = vpack.c.bf16 %v191, %v190
        %v213 = vpack.c.bf16 %v193, %v192
        %v214 = vpack.c.bf16 %v195, %v194
        %v215 = vpack.c.bf16 %v197, %v196
        %v216 = vpack.c.bf16 %v199, %v198
        %v217 = vpack.c.bf16 %v201, %v200
        %v218 = vld [vmem:[%s1] sm:$0x3]
        %v219 = vld [vmem:[%s168 + $0x1] sm:$0xff]
        %v220 = vld [vmem:[%s168 + $0x9] sm:$0xff]
        %v221 = vld [vmem:[%s168 + $0x19] sm:$0xff]
        %v222 = vld [vmem:[%s168 + $0x21] sm:$0xff]
        %v223 = vld [vmem:[%s168 + $0x31] sm:$0xff]
        %v224 = vld [vmem:[%s168 + $0x39] sm:$0xff]
        %v225 = vld [vmem:[%s168 + $0x49] sm:$0xff]
        %v226 = vld [vmem:[%s168 + $0x51] sm:$0xff]
        %v227 = vld [vmem:[%s168 + $0x61] sm:$0xff]
        %v228 = vld [vmem:[%s168 + $0x69] sm:$0xff]
        %v229 = vld [vmem:[%s168 + $0x79] sm:$0xff]
        %v230 = vld [vmem:[%s168 + $0x81] sm:$0xff]
        %v231 = vld [vmem:[%s168 + $0x91] sm:$0xff]
        %v232 = vld [vmem:[%s168 + $0x99] sm:$0xff]
        %v233 = vld [vmem:[%s168 + $0xa9] sm:$0xff]
        %v234 = vld [vmem:[%s168 + $0xb1] sm:$0xff]
        %v235 = vld [vmem:[%s168 + $0xc1] sm:$0xff]
        %v236 = vld [vmem:[%s168 + $0xc9] sm:$0xff]
        %v237 = vld [vmem:[%s168 + $0xd9] sm:$0xff]
        %v238 = vld [vmem:[%s168 + $0xe1] sm:$0xff]
        %v239 = vld [vmem:[%s168 + $0xf1] sm:$0xff]
        %v240 = vld [vmem:[%s168 + $0xf9] sm:$0xff]
        %v241 = vld [vmem:[%s168 + $0x109] sm:$0xff]
        %v242 = vld [vmem:[%s168 + $0x111] sm:$0xff]
        %v243 = vld [vmem:[%s168 + $0x121] sm:$0xff]
        %v244 = vld [vmem:[%s168 + $0x129] sm:$0xff]
        %v245 = vld [vmem:[%s168 + $0x139] sm:$0xff]
        %v246 = vld [vmem:[%s168 + $0x141] sm:$0xff]
        %v247 = vld [vmem:[%s168 + $0x151] sm:$0xff]
        %v248 = vld [vmem:[%s168 + $0x159] sm:$0xff]
        %v249 = vld [vmem:[%s168 + $0x169] sm:$0xff]
        %v250 = vld [vmem:[%s168 + $0x171] sm:$0xff]
        %v251 = vpack.c.bf16 %v220, %v219
        %v252 = vpack.c.bf16 %v222, %v221
        %v253 = vpack.c.bf16 %v224, %v223
        %v254 = vpack.c.bf16 %v226, %v225
        %v255 = vpack.c.bf16 %v228, %v227
        %v256 = vpack.c.bf16 %v230, %v229
        %v257 = vpack.c.bf16 %v232, %v231
        %v258 = vpack.c.bf16 %v234, %v233
        %v259 = vpack.c.bf16 %v236, %v235
        %v260 = vpack.c.bf16 %v238, %v237
        %v261 = vpack.c.bf16 %v240, %v239
        %v262 = vpack.c.bf16 %v242, %v241
        %v263 = vpack.c.bf16 %v244, %v243
        %v264 = vpack.c.bf16 %v246, %v245
        %v265 = vpack.c.bf16 %v248, %v247
        %v266 = vpack.c.bf16 %v250, %v249
        %s267 = scalar_lea.vmem %s1, 2
        %v268 = vld [vmem:[%s267] sm:$0x3]
        %vm269 = vcmask 23552
        %v271 = vsel %vm269, %v251, 0
        %v274 = vsel %vm269, %v252, 0
        %v277 = vsel %vm269, %v253, 0
        %v280 = vsel %vm269, %v254, 0
        %v283 = vsel %vm269, %v255, 0
        %v286 = vsel %vm269, %v256, 0
        %v289 = vsel %vm269, %v257, 0
        %v292 = vsel %vm269, %v258, 0
        %v295 = vsel %vm269, %v259, 0
        %v298 = vsel %vm269, %v260, 0
        %v301 = vsel %vm269, %v261, 0
        %v304 = vsel %vm269, %v262, 0
        %v307 = vsel %vm269, %v263, 0
        %v310 = vsel %vm269, %v264, 0
        %v313 = vsel %vm269, %v265, 0
        %v316 = vsel %vm269, %v266, 0
        %vm318 = vcmask 1040384
        %vm319 = vcmask 1041408
        %v320 = vsel %vm318, 4294967295, 65535
        %v321 = vsel %vm319, %v320, 0
        %v323 = vand.u32 %v268, %v321
        %325 = vmatprep.subr.bf16.mxu0 0
        %326 = vmatpush1.bf16.msra.mxu0 %v323
        %327 = vmatprep.subr.bf16.mxu0 0
        %328 = vmatpush1.bf16.msra.mxu0 0
        %329 = vmatprep.subr.bf16.mxu0 0
        %330 = vmatpush1.bf16.msra.mxu0 0
        %331 = vmatprep.subr.bf16.mxu0 0
        %332 = vmatpush1.bf16.msra.mxu0 0
        %333 = vmatprep.subr.bf16.mxu0 0
        %334 = vmatpush1.bf16.msra.mxu0 0
        %335 = vmatprep.subr.bf16.mxu0 0
        %336 = vmatpush1.bf16.msra.mxu0 0
        %337 = vmatprep.subr.bf16.mxu0 0
        %338 = vmatpush1.bf16.msra.mxu0 0
        %339 = vmatprep.subr.bf16.mxu0 0
        %340 = vmatpush1.bf16.msra.mxu0 0
        %341 = vmatprep.subr.bf16.mxu0 0
        %342 = vmatpush1.bf16.msra.mxu0 0
        %343 = vmatprep.subr.bf16.mxu0 0
        %344 = vmatpush1.bf16.msra.mxu0 0
        %345 = vmatprep.subr.bf16.mxu0 0
        %346 = vmatpush1.bf16.msra.mxu0 0
        %347 = vmatprep.subr.bf16.mxu0 0
        %348 = vmatpush1.bf16.msra.mxu0 0
        %349 = vmatprep.subr.bf16.mxu0 0
        %350 = vmatpush1.bf16.msra.mxu0 0
        %351 = vmatprep.subr.bf16.mxu0 0
        %352 = vmatpush1.bf16.msra.mxu0 0
        %353 = vmatprep.subr.bf16.mxu0 0
        %354 = vmatpush1.bf16.msra.mxu0 0
        %355 = vmatprep.subr.bf16.mxu0 0
        %356 = vmatpush1.bf16.msra.mxu0 0
        %357 = vmatprep.mubr.bf16.mxu0 0
        %358 = vmatmul.mubr.bf16.gmra.mrb[0].mxu0 %v271
        %v359 = vpop.f32.mrb[0].mxu0
        %v360 = vadd.f32 0.0, %v359
        %v361 = vpop.f32.mrb[0].mxu0
        %v362 = vpop.f32.mrb[0].mxu0
        %v363 = vadd.f32 0.0, %v362
        %v364 = vpop.f32.mrb[0].mxu0
        %365 = vmatprep.mubr.bf16.mxu0 0
        %366 = vmatmul.mubr.bf16.gmra.mrb[0].mxu0 %v274
        %v367 = vpop.f32.mrb[0].mxu0
        %v368 = vadd.f32 0.0, %v367
        %v369 = vpop.f32.mrb[0].mxu0
        %v370 = vpop.f32.mrb[0].mxu0
        %v371 = vadd.f32 0.0, %v370
        %v372 = vpop.f32.mrb[0].mxu0
        %373 = vmatprep.mubr.bf16.mxu0 0
        %374 = vmatmul.mubr.bf16.gmra.mrb[0].mxu0 %v277
        %v375 = vpop.f32.mrb[0].mxu0
        %v376 = vadd.f32 0.0, %v375
        %v377 = vpop.f32.mrb[0].mxu0
        %v378 = vpop.f32.mrb[0].mxu0
        %v379 = vadd.f32 0.0, %v378
        %v380 = vpop.f32.mrb[0].mxu0
        %381 = vmatprep.mubr.bf16.mxu0 0
        %382 = vmatmul.mubr.bf16.gmra.mrb[0].mxu0 %v280
        %v383 = vpop.f32.mrb[0].mxu0
        %v384 = vadd.f32 0.0, %v383
        %v385 = vpop.f32.mrb[0].mxu0
        %v386 = vpop.f32.mrb[0].mxu0
        %v387 = vadd.f32 0.0, %v386
        %v388 = vpop.f32.mrb[0].mxu0
        %389 = vmatprep.mubr.bf16.mxu0 0
        %390 = vmatmul.mubr.bf16.gmra.mrb[0].mxu0 %v283
        %v391 = vpop.f32.mrb[0].mxu0
        %v392 = vadd.f32 0.0, %v391
        %v393 = vpop.f32.mrb[0].mxu0
        %v394 = vpop.f32.mrb[0].mxu0
        %v395 = vadd.f32 0.0, %v394
        %v396 = vpop.f32.mrb[0].mxu0
        %397 = vmatprep.mubr.bf16.mxu0 0
        %398 = vmatmul.mubr.bf16.gmra.mrb[0].mxu0 %v286
        %v399 = vpop.f32.mrb[0].mxu0
        %v400 = vadd.f32 0.0, %v399
        %v401 = vpop.f32.mrb[0].mxu0
        %v402 = vpop.f32.mrb[0].mxu0
        %v403 = vadd.f32 0.0, %v402
        %v404 = vpop.f32.mrb[0].mxu0
        %405 = vmatprep.mubr.bf16.mxu0 0
        %406 = vmatmul.mubr.bf16.gmra.mrb[0].mxu0 %v289
        %v407 = vpop.f32.mrb[0].mxu0
        %v408 = vadd.f32 0.0, %v407
        %v409 = vpop.f32.mrb[0].mxu0
        %v410 = vpop.f32.mrb[0].mxu0
        %v411 = vadd.f32 0.0, %v410
        %v412 = vpop.f32.mrb[0].mxu0
        %413 = vmatprep.mubr.bf16.mxu0 0
        %414 = vmatmul.mubr.bf16.gmra.mrb[0].mxu0 %v292
        %v415 = vpop.f32.mrb[0].mxu0
        %v416 = vadd.f32 0.0, %v415
        %v417 = vpop.f32.mrb[0].mxu0
        %v418 = vpop.f32.mrb[0].mxu0
        %v419 = vadd.f32 0.0, %v418
        %v420 = vpop.f32.mrb[0].mxu0
        %421 = vmatprep.mubr.bf16.mxu0 0
        %422 = vmatmul.mubr.bf16.gmra.mrb[0].mxu0 %v295
        %v423 = vpop.f32.mrb[0].mxu0
        %v424 = vadd.f32 0.0, %v423
        %v425 = vpop.f32.mrb[0].mxu0
        %v426 = vpop.f32.mrb[0].mxu0
        %v427 = vadd.f32 0.0, %v426
        %v428 = vpop.f32.mrb[0].mxu0
        %429 = vmatprep.mubr.bf16.mxu0 0
        %430 = vmatmul.mubr.bf16.gmra.mrb[0].mxu0 %v298
        %v431 = vpop.f32.mrb[0].mxu0
        %v432 = vadd.f32 0.0, %v431
        %v433 = vpop.f32.mrb[0].mxu0
        %v434 = vpop.f32.mrb[0].mxu0
        %v435 = vadd.f32 0.0, %v434
        %v436 = vpop.f32.mrb[0].mxu0
        %437 = vmatprep.mubr.bf16.mxu0 0
        %438 = vmatmul.mubr.bf16.gmra.mrb[0].mxu0 %v301
        %v439 = vpop.f32.mrb[0].mxu0
        %v440 = vadd.f32 0.0, %v439
        %v441 = vpop.f32.mrb[0].mxu0
        %v442 = vpop.f32.mrb[0].mxu0
        %v443 = vadd.f32 0.0, %v442
        %v444 = vpop.f32.mrb[0].mxu0
        %445 = vmatprep.mubr.bf16.mxu0 0
        %446 = vmatmul.mubr.bf16.gmra.mrb[0].mxu0 %v304
        %v447 = vpop.f32.mrb[0].mxu0
        %v448 = vadd.f32 0.0, %v447
        %v449 = vpop.f32.mrb[0].mxu0
        %v450 = vpop.f32.mrb[0].mxu0
        %v451 = vadd.f32 0.0, %v450
        %v452 = vpop.f32.mrb[0].mxu0
        %453 = vmatprep.mubr.bf16.mxu0 0
        %454 = vmatmul.mubr.bf16.gmra.mrb[0].mxu0 %v307
        %v455 = vpop.f32.mrb[0].mxu0
        %v456 = vadd.f32 0.0, %v455
        %v457 = vpop.f32.mrb[0].mxu0
        %v458 = vpop.f32.mrb[0].mxu0
        %v459 = vadd.f32 0.0, %v458
        %v460 = vpop.f32.mrb[0].mxu0
        %461 = vmatprep.mubr.bf16.mxu0 0
        %462 = vmatmul.mubr.bf16.gmra.mrb[0].mxu0 %v310
        %v463 = vpop.f32.mrb[0].mxu0
        %v464 = vadd.f32 0.0, %v463
        %v465 = vpop.f32.mrb[0].mxu0
        %v466 = vpop.f32.mrb[0].mxu0
        %v467 = vadd.f32 0.0, %v466
        %v468 = vpop.f32.mrb[0].mxu0
        %469 = vmatprep.mubr.bf16.mxu0 0
        %470 = vmatmul.mubr.bf16.gmra.mrb[0].mxu0 %v313
        %v471 = vpop.f32.mrb[0].mxu0
        %v472 = vadd.f32 0.0, %v471
        %v473 = vpop.f32.mrb[0].mxu0
        %v474 = vpop.f32.mrb[0].mxu0
        %v475 = vadd.f32 0.0, %v474
        %v476 = vpop.f32.mrb[0].mxu0
        %477 = vmatprep.mubr.bf16.mxu0 0
        %478 = vmatmul.mubr.bf16.gmra.mrb[0].mxu0 %v316
        %v479 = vpop.f32.mrb[0].mxu0
        %v480 = vadd.f32 0.0, %v479
        %v481 = vpop.f32.mrb[0].mxu0
        %v482 = vpop.f32.mrb[0].mxu0
        %v483 = vadd.f32 0.0, %v482
        %v484 = vpop.f32.mrb[0].mxu0
        %485 = vdwg.mxu0
        %v487 = vsel %vm269, %v202, 0
        %v490 = vsel %vm269, %v203, 0
        %v493 = vsel %vm269, %v204, 0
        %v496 = vsel %vm269, %v205, 0
        %v499 = vsel %vm269, %v206, 0
        %v502 = vsel %vm269, %v207, 0
        %v505 = vsel %vm269, %v208, 0
        %v508 = vsel %vm269, %v209, 0
        %v511 = vsel %vm269, %v210, 0
        %v514 = vsel %vm269, %v211, 0
        %v517 = vsel %vm269, %v212, 0
        %v520 = vsel %vm269, %v213, 0
        %v523 = vsel %vm269, %v214, 0
        %v526 = vsel %vm269, %v215, 0
        %v529 = vsel %vm269, %v216, 0
        %v532 = vsel %vm269, %v217, 0
        %v535 = vand.u32 %v218, %v321
        %537 = vmatprep.subr.bf16.mxu0 0
        %538 = vmatpush1.bf16.msra.mxu0 %v535
        %539 = vmatprep.subr.bf16.mxu0 0
        %540 = vmatpush1.bf16.msra.mxu0 0
        %541 = vmatprep.subr.bf16.mxu0 0
        %542 = vmatpush1.bf16.msra.mxu0 0
        %543 = vmatprep.subr.bf16.mxu0 0
        %544 = vmatpush1.bf16.msra.mxu0 0
        %545 = vmatprep.subr.bf16.mxu0 0
        %546 = vmatpush1.bf16.msra.mxu0 0
        %547 = vmatprep.subr.bf16.mxu0 0
        %548 = vmatpush1.bf16.msra.mxu0 0
        %549 = vmatprep.subr.bf16.mxu0 0
        %550 = vmatpush1.bf16.msra.mxu0 0
        %551 = vmatprep.subr.bf16.mxu0 0
        %552 = vmatpush1.bf16.msra.mxu0 0
        %553 = vmatprep.subr.bf16.mxu0 0
        %554 = vmatpush1.bf16.msra.mxu0 0
        %555 = vmatprep.subr.bf16.mxu0 0
        %556 = vmatpush1.bf16.msra.mxu0 0
        %557 = vmatprep.subr.bf16.mxu0 0
        %558 = vmatpush1.bf16.msra.mxu0 0
        %559 = vmatprep.subr.bf16.mxu0 0
        %560 = vmatpush1.bf16.msra.mxu0 0
        %561 = vmatprep.subr.bf16.mxu0 0
        %562 = vmatpush1.bf16.msra.mxu0 0
        %563 = vmatprep.subr.bf16.mxu0 0
        %564 = vmatpush1.bf16.msra.mxu0 0
        %565 = vmatprep.subr.bf16.mxu0 0
        %566 = vmatpush1.bf16.msra.mxu0 0
        %567 = vmatprep.subr.bf16.mxu0 0
        %568 = vmatpush1.bf16.msra.mxu0 0
        %569 = vmatprep.mubr.bf16.mxu0 0
        %570 = vmatmul.mubr.bf16.gmra.mrb[0].mxu0 %v487
        %v571 = vpop.f32.mrb[0].mxu0
        %v572 = vadd.f32 %v360, %v571
        %v573 = vpop.f32.mrb[0].mxu0
        %v574 = vpop.f32.mrb[0].mxu0
        %v575 = vadd.f32 %v363, %v574
        %v576 = vpop.f32.mrb[0].mxu0
        %577 = vmatprep.mubr.bf16.mxu0 0
        %578 = vmatmul.mubr.bf16.gmra.mrb[0].mxu0 %v490
        %v579 = vpop.f32.mrb[0].mxu0
        %v580 = vadd.f32 %v368, %v579
        %v581 = vpop.f32.mrb[0].mxu0
        %v582 = vpop.f32.mrb[0].mxu0
        %v583 = vadd.f32 %v371, %v582
        %v584 = vpop.f32.mrb[0].mxu0
        %585 = vmatprep.mubr.bf16.mxu0 0
        %586 = vmatmul.mubr.bf16.gmra.mrb[0].mxu0 %v493
        %v587 = vpop.f32.mrb[0].mxu0
        %v588 = vadd.f32 %v376, %v587
        %v589 = vpop.f32.mrb[0].mxu0
        %v590 = vpop.f32.mrb[0].mxu0
        %v591 = vadd.f32 %v379, %v590
        %v592 = vpop.f32.mrb[0].mxu0
        %593 = vmatprep.mubr.bf16.mxu0 0
        %594 = vmatmul.mubr.bf16.gmra.mrb[0].mxu0 %v496
        %v595 = vpop.f32.mrb[0].mxu0
        %v596 = vadd.f32 %v384, %v595
        %v597 = vpop.f32.mrb[0].mxu0
        %v598 = vpop.f32.mrb[0].mxu0
        %v599 = vadd.f32 %v387, %v598
        %v600 = vpop.f32.mrb[0].mxu0
        %601 = vmatprep.mubr.bf16.mxu0 0
        %602 = vmatmul.mubr.bf16.gmra.mrb[0].mxu0 %v499
        %v603 = vpop.f32.mrb[0].mxu0
        %v604 = vadd.f32 %v392, %v603
        %v605 = vpop.f32.mrb[0].mxu0
        %v606 = vpop.f32.mrb[0].mxu0
        %v607 = vadd.f32 %v395, %v606
        %v608 = vpop.f32.mrb[0].mxu0
        %609 = vmatprep.mubr.bf16.mxu0 0
        %610 = vmatmul.mubr.bf16.gmra.mrb[0].mxu0 %v502
        %v611 = vpop.f32.mrb[0].mxu0
        %v612 = vadd.f32 %v400, %v611
        %v613 = vpop.f32.mrb[0].mxu0
        %v614 = vpop.f32.mrb[0].mxu0
        %v615 = vadd.f32 %v403, %v614
        %v616 = vpop.f32.mrb[0].mxu0
        %617 = vmatprep.mubr.bf16.mxu0 0
        %618 = vmatmul.mubr.bf16.gmra.mrb[0].mxu0 %v505
        %v619 = vpop.f32.mrb[0].mxu0
        %v620 = vadd.f32 %v408, %v619
        %v621 = vpop.f32.mrb[0].mxu0
        %v622 = vpop.f32.mrb[0].mxu0
        %v623 = vadd.f32 %v411, %v622
        %v624 = vpop.f32.mrb[0].mxu0
        %625 = vmatprep.mubr.bf16.mxu0 0
        %626 = vmatmul.mubr.bf16.gmra.mrb[0].mxu0 %v508
        %v627 = vpop.f32.mrb[0].mxu0
        %v628 = vadd.f32 %v416, %v627
        %v629 = vpop.f32.mrb[0].mxu0
        %v630 = vpop.f32.mrb[0].mxu0
        %v631 = vadd.f32 %v419, %v630
        %v632 = vpop.f32.mrb[0].mxu0
        %633 = vmatprep.mubr.bf16.mxu0 0
        %634 = vmatmul.mubr.bf16.gmra.mrb[0].mxu0 %v511
        %v635 = vpop.f32.mrb[0].mxu0
        %v636 = vadd.f32 %v424, %v635
        %v637 = vpop.f32.mrb[0].mxu0
        %v638 = vpop.f32.mrb[0].mxu0
        %v639 = vadd.f32 %v427, %v638
        %v640 = vpop.f32.mrb[0].mxu0
        %641 = vmatprep.mubr.bf16.mxu0 0
        %642 = vmatmul.mubr.bf16.gmra.mrb[0].mxu0 %v514
        %v643 = vpop.f32.mrb[0].mxu0
        %v644 = vadd.f32 %v432, %v643
        %v645 = vpop.f32.mrb[0].mxu0
        %v646 = vpop.f32.mrb[0].mxu0
        %v647 = vadd.f32 %v435, %v646
        %v648 = vpop.f32.mrb[0].mxu0
        %649 = vmatprep.mubr.bf16.mxu0 0
        %650 = vmatmul.mubr.bf16.gmra.mrb[0].mxu0 %v517
        %v651 = vpop.f32.mrb[0].mxu0
        %v652 = vadd.f32 %v440, %v651
        %v653 = vpop.f32.mrb[0].mxu0
        %v654 = vpop.f32.mrb[0].mxu0
        %v655 = vadd.f32 %v443, %v654
        %v656 = vpop.f32.mrb[0].mxu0
        %657 = vmatprep.mubr.bf16.mxu0 0
        %658 = vmatmul.mubr.bf16.gmra.mrb[0].mxu0 %v520
        %v659 = vpop.f32.mrb[0].mxu0
        %v660 = vadd.f32 %v448, %v659
        %v661 = vpop.f32.mrb[0].mxu0
        %v662 = vpop.f32.mrb[0].mxu0
        %v663 = vadd.f32 %v451, %v662
        %v664 = vpop.f32.mrb[0].mxu0
        %665 = vmatprep.mubr.bf16.mxu0 0
        %666 = vmatmul.mubr.bf16.gmra.mrb[0].mxu0 %v523
        %v667 = vpop.f32.mrb[0].mxu0
        %v668 = vadd.f32 %v456, %v667
        %v669 = vpop.f32.mrb[0].mxu0
        %v670 = vpop.f32.mrb[0].mxu0
        %v671 = vadd.f32 %v459, %v670
        %v672 = vpop.f32.mrb[0].mxu0
        %673 = vmatprep.mubr.bf16.mxu0 0
        %674 = vmatmul.mubr.bf16.gmra.mrb[0].mxu0 %v526
        %v675 = vpop.f32.mrb[0].mxu0
        %v676 = vadd.f32 %v464, %v675
        %v677 = vpop.f32.mrb[0].mxu0
        %v678 = vpop.f32.mrb[0].mxu0
        %v679 = vadd.f32 %v467, %v678
        %v680 = vpop.f32.mrb[0].mxu0
        %681 = vmatprep.mubr.bf16.mxu0 0
        %682 = vmatmul.mubr.bf16.gmra.mrb[0].mxu0 %v529
        %v683 = vpop.f32.mrb[0].mxu0
        %v684 = vadd.f32 %v472, %v683
        %v685 = vpop.f32.mrb[0].mxu0
        %v686 = vpop.f32.mrb[0].mxu0
        %v687 = vadd.f32 %v475, %v686
        %v688 = vpop.f32.mrb[0].mxu0
        %689 = vmatprep.mubr.bf16.mxu0 0
        %690 = vmatmul.mubr.bf16.gmra.mrb[0].mxu0 %v532
        %v691 = vpop.f32.mrb[0].mxu0
        %v692 = vadd.f32 %v480, %v691
        %v693 = vpop.f32.mrb[0].mxu0
        %v694 = vpop.f32.mrb[0].mxu0
        %v695 = vadd.f32 %v483, %v694
        %v696 = vpop.f32.mrb[0].mxu0
        %697 = vdwg.mxu0
        %v698 = vld [vmem:[%s168 + $0x2] sm:$0xff]
        %v699 = vld [vmem:[%s168 + $0xa] sm:$0xff]
        %v700 = vld [vmem:[%s168 + $0x1a] sm:$0xff]
        %v701 = vld [vmem:[%s168 + $0x22] sm:$0xff]
        %v702 = vld [vmem:[%s168 + $0x32] sm:$0xff]
        %v703 = vld [vmem:[%s168 + $0x3a] sm:$0xff]
        %v704 = vld [vmem:[%s168 + $0x4a] sm:$0xff]
        %v705 = vld [vmem:[%s168 + $0x52] sm:$0xff]
        %v706 = vld [vmem:[%s168 + $0x62] sm:$0xff]
        %v707 = vld [vmem:[%s168 + $0x6a] sm:$0xff]
        %v708 = vld [vmem:[%s168 + $0x7a] sm:$0xff]
        %v709 = vld [vmem:[%s168 + $0x82] sm:$0xff]
        %v710 = vld [vmem:[%s168 + $0x92] sm:$0xff]
        %v711 = vld [vmem:[%s168 + $0x9a] sm:$0xff]
        %v712 = vld [vmem:[%s168 + $0xaa] sm:$0xff]
        %v713 = vld [vmem:[%s168 + $0xb2] sm:$0xff]
        %v714 = vld [vmem:[%s168 + $0xc2] sm:$0xff]
        %v715 = vld [vmem:[%s168 + $0xca] sm:$0xff]
        %v716 = vld [vmem:[%s168 + $0xda] sm:$0xff]
        %v717 = vld [vmem:[%s168 + $0xe2] sm:$0xff]
        %v718 = vld [vmem:[%s168 + $0xf2] sm:$0xff]
        %v719 = vld [vmem:[%s168 + $0xfa] sm:$0xff]
        %v720 = vld [vmem:[%s168 + $0x10a] sm:$0xff]
        %v721 = vld [vmem:[%s168 + $0x112] sm:$0xff]
        %v722 = vld [vmem:[%s168 + $0x122] sm:$0xff]
        %v723 = vld [vmem:[%s168 + $0x12a] sm:$0xff]
        %v724 = vld [vmem:[%s168 + $0x13a] sm:$0xff]
        %v725 = vld [vmem:[%s168 + $0x142] sm:$0xff]
        %v726 = vld [vmem:[%s168 + $0x152] sm:$0xff]
        %v727 = vld [vmem:[%s168 + $0x15a] sm:$0xff]
        %v728 = vld [vmem:[%s168 + $0x16a] sm:$0xff]
        %v729 = vld [vmem:[%s168 + $0x172] sm:$0xff]
        %v730 = vpack.c.bf16 %v699, %v698
        %v731 = vpack.c.bf16 %v701, %v700
        %v732 = vpack.c.bf16 %v703, %v702
        %v733 = vpack.c.bf16 %v705, %v704
        %v734 = vpack.c.bf16 %v707, %v706
        %v735 = vpack.c.bf16 %v709, %v708
        %v736 = vpack.c.bf16 %v711, %v710
        %v737 = vpack.c.bf16 %v713, %v712
        %v738 = vpack.c.bf16 %v715, %v714
        %v739 = vpack.c.bf16 %v717, %v716
        %v740 = vpack.c.bf16 %v719, %v718
        %v741 = vpack.c.bf16 %v721, %v720
        %v742 = vpack.c.bf16 %v723, %v722
        %v743 = vpack.c.bf16 %v725, %v724
        %v744 = vpack.c.bf16 %v727, %v726
        %v745 = vpack.c.bf16 %v729, %v728
        %s746 = scalar_lea.vmem %s1, 4
        %v747 = vld [vmem:[%s746] sm:$0x3]
        %v749 = vsel %vm269, %v730, 0
        %v752 = vsel %vm269, %v731, 0
        %v755 = vsel %vm269, %v732, 0
        %v758 = vsel %vm269, %v733, 0
        %v761 = vsel %vm269, %v734, 0
        %v764 = vsel %vm269, %v735, 0
        %v767 = vsel %vm269, %v736, 0
        %v770 = vsel %vm269, %v737, 0
        %v773 = vsel %vm269, %v738, 0
        %v776 = vsel %vm269, %v739, 0
        %v779 = vsel %vm269, %v740, 0
        %v782 = vsel %vm269, %v741, 0
        %v785 = vsel %vm269, %v742, 0
        %v788 = vsel %vm269, %v743, 0
        %v791 = vsel %vm269, %v744, 0
        %v794 = vsel %vm269, %v745, 0
        %v797 = vand.u32 %v747, %v321
        %799 = vmatprep.subr.bf16.mxu0 0
        %800 = vmatpush1.bf16.msra.mxu0 %v797
        %801 = vmatprep.subr.bf16.mxu0 0
        %802 = vmatpush1.bf16.msra.mxu0 0
        %803 = vmatprep.subr.bf16.mxu0 0
        %804 = vmatpush1.bf16.msra.mxu0 0
        %805 = vmatprep.subr.bf16.mxu0 0
        %806 = vmatpush1.bf16.msra.mxu0 0
        %807 = vmatprep.subr.bf16.mxu0 0
        %808 = vmatpush1.bf16.msra.mxu0 0
        %809 = vmatprep.subr.bf16.mxu0 0
        %810 = vmatpush1.bf16.msra.mxu0 0
        %811 = vmatprep.subr.bf16.mxu0 0
        %812 = vmatpush1.bf16.msra.mxu0 0
        %813 = vmatprep.subr.bf16.mxu0 0
        %814 = vmatpush1.bf16.msra.mxu0 0
        %815 = vmatprep.subr.bf16.mxu0 0
        %816 = vmatpush1.bf16.msra.mxu0 0
        %817 = vmatprep.subr.bf16.mxu0 0
        %818 = vmatpush1.bf16.msra.mxu0 0
        %819 = vmatprep.subr.bf16.mxu0 0
        %820 = vmatpush1.bf16.msra.mxu0 0
        %821 = vmatprep.subr.bf16.mxu0 0
        %822 = vmatpush1.bf16.msra.mxu0 0
        %823 = vmatprep.subr.bf16.mxu0 0
        %824 = vmatpush1.bf16.msra.mxu0 0
        %825 = vmatprep.subr.bf16.mxu0 0
        %826 = vmatpush1.bf16.msra.mxu0 0
        %827 = vmatprep.subr.bf16.mxu0 0
        %828 = vmatpush1.bf16.msra.mxu0 0
        %829 = vmatprep.subr.bf16.mxu0 0
        %830 = vmatpush1.bf16.msra.mxu0 0
        %831 = vmatprep.mubr.bf16.mxu0 0
        %832 = vmatmul.mubr.bf16.gmra.mrb[0].mxu0 %v749
        %v833 = vpop.f32.mrb[0].mxu0
        %v834 = vadd.f32 0.0, %v833
        %v835 = vpop.f32.mrb[0].mxu0
        %v836 = vpop.f32.mrb[0].mxu0
        %v837 = vadd.f32 0.0, %v836
        %v838 = vpop.f32.mrb[0].mxu0
        %839 = vmatprep.mubr.bf16.mxu0 0
        %840 = vmatmul.mubr.bf16.gmra.mrb[0].mxu0 %v752
        %v841 = vpop.f32.mrb[0].mxu0
        %v842 = vadd.f32 0.0, %v841
        %v843 = vpop.f32.mrb[0].mxu0
        %v844 = vpop.f32.mrb[0].mxu0
        %v845 = vadd.f32 0.0, %v844
        %v846 = vpop.f32.mrb[0].mxu0
        %847 = vmatprep.mubr.bf16.mxu0 0
        %848 = vmatmul.mubr.bf16.gmra.mrb[0].mxu0 %v755
        %v849 = vpop.f32.mrb[0].mxu0
        %v850 = vadd.f32 0.0, %v849
        %v851 = vpop.f32.mrb[0].mxu0
        %v852 = vpop.f32.mrb[0].mxu0
        %v853 = vadd.f32 0.0, %v852
        %v854 = vpop.f32.mrb[0].mxu0
        %855 = vmatprep.mubr.bf16.mxu0 0
        %856 = vmatmul.mubr.bf16.gmra.mrb[0].mxu0 %v758
        %v857 = vpop.f32.mrb[0].mxu0
        %v858 = vadd.f32 0.0, %v857
        %v859 = vpop.f32.mrb[0].mxu0
        %v860 = vpop.f32.mrb[0].mxu0
        %v861 = vadd.f32 0.0, %v860
        %v862 = vpop.f32.mrb[0].mxu0
        %863 = vmatprep.mubr.bf16.mxu0 0
        %864 = vmatmul.mubr.bf16.gmra.mrb[0].mxu0 %v761
        %v865 = vpop.f32.mrb[0].mxu0
        %v866 = vadd.f32 0.0, %v865
        %v867 = vpop.f32.mrb[0].mxu0
        %v868 = vpop.f32.mrb[0].mxu0
        %v869 = vadd.f32 0.0, %v868
        %v870 = vpop.f32.mrb[0].mxu0
        %871 = vmatprep.mubr.bf16.mxu0 0
        %872 = vmatmul.mubr.bf16.gmra.mrb[0].mxu0 %v764
        %v873 = vpop.f32.mrb[0].mxu0
        %v874 = vadd.f32 0.0, %v873
        %v875 = vpop.f32.mrb[0].mxu0
        %v876 = vpop.f32.mrb[0].mxu0
        %v877 = vadd.f32 0.0, %v876
        %v878 = vpop.f32.mrb[0].mxu0
        %879 = vmatprep.mubr.bf16.mxu0 0
        %880 = vmatmul.mubr.bf16.gmra.mrb[0].mxu0 %v767
        %v881 = vpop.f32.mrb[0].mxu0
        %v882 = vadd.f32 0.0, %v881
        %v883 = vpop.f32.mrb[0].mxu0
        %v884 = vpop.f32.mrb[0].mxu0
        %v885 = vadd.f32 0.0, %v884
        %v886 = vpop.f32.mrb[0].mxu0
        %887 = vmatprep.mubr.bf16.mxu0 0
        %888 = vmatmul.mubr.bf16.gmra.mrb[0].mxu0 %v770
        %v889 = vpop.f32.mrb[0].mxu0
        %v890 = vadd.f32 0.0, %v889
        %v891 = vpop.f32.mrb[0].mxu0
        %v892 = vpop.f32.mrb[0].mxu0
        %v893 = vadd.f32 0.0, %v892
        %v894 = vpop.f32.mrb[0].mxu0
        %895 = vmatprep.mubr.bf16.mxu0 0
        %896 = vmatmul.mubr.bf16.gmra.mrb[0].mxu0 %v773
        %v897 = vpop.f32.mrb[0].mxu0
        %v898 = vadd.f32 0.0, %v897
        %v899 = vpop.f32.mrb[0].mxu0
        %v900 = vpop.f32.mrb[0].mxu0
        %v901 = vadd.f32 0.0, %v900
        %v902 = vpop.f32.mrb[0].mxu0
        %903 = vmatprep.mubr.bf16.mxu0 0
        %904 = vmatmul.mubr.bf16.gmra.mrb[0].mxu0 %v776
        %v905 = vpop.f32.mrb[0].mxu0
        %v906 = vadd.f32 0.0, %v905
        %v907 = vpop.f32.mrb[0].mxu0
        %v908 = vpop.f32.mrb[0].mxu0
        %v909 = vadd.f32 0.0, %v908
        %v910 = vpop.f32.mrb[0].mxu0
        %911 = vmatprep.mubr.bf16.mxu0 0
        %912 = vmatmul.mubr.bf16.gmra.mrb[0].mxu0 %v779
        %v913 = vpop.f32.mrb[0].mxu0
        %v914 = vadd.f32 0.0, %v913
        %v915 = vpop.f32.mrb[0].mxu0
        %v916 = vpop.f32.mrb[0].mxu0
        %v917 = vadd.f32 0.0, %v916
        %v918 = vpop.f32.mrb[0].mxu0
        %919 = vmatprep.mubr.bf16.mxu0 0
        %920 = vmatmul.mubr.bf16.gmra.mrb[0].mxu0 %v782
        %v921 = vpop.f32.mrb[0].mxu0
        %v922 = vadd.f32 0.0, %v921
        %v923 = vpop.f32.mrb[0].mxu0
        %v924 = vpop.f32.mrb[0].mxu0
        %v925 = vadd.f32 0.0, %v924
        %v926 = vpop.f32.mrb[0].mxu0
        %927 = vmatprep.mubr.bf16.mxu0 0
        %928 = vmatmul.mubr.bf16.gmra.mrb[0].mxu0 %v785
        %v929 = vpop.f32.mrb[0].mxu0
        %v930 = vadd.f32 0.0, %v929
        %v931 = vpop.f32.mrb[0].mxu0
        %v932 = vpop.f32.mrb[0].mxu0
        %v933 = vadd.f32 0.0, %v932
        %v934 = vpop.f32.mrb[0].mxu0
        %935 = vmatprep.mubr.bf16.mxu0 0
        %936 = vmatmul.mubr.bf16.gmra.mrb[0].mxu0 %v788
        %v937 = vpop.f32.mrb[0].mxu0
        %v938 = vadd.f32 0.0, %v937
        %v939 = vpop.f32.mrb[0].mxu0
        %v940 = vpop.f32.mrb[0].mxu0
        %v941 = vadd.f32 0.0, %v940
        %v942 = vpop.f32.mrb[0].mxu0
        %943 = vmatprep.mubr.bf16.mxu0 0
        %944 = vmatmul.mubr.bf16.gmra.mrb[0].mxu0 %v791
        %v945 = vpop.f32.mrb[0].mxu0
        %v946 = vadd.f32 0.0, %v945
        %v947 = vpop.f32.mrb[0].mxu0
        %v948 = vpop.f32.mrb[0].mxu0
        %v949 = vadd.f32 0.0, %v948
        %v950 = vpop.f32.mrb[0].mxu0
        %951 = vmatprep.mubr.bf16.mxu0 0
        %952 = vmatmul.mubr.bf16.gmra.mrb[0].mxu0 %v794
        %v953 = vpop.f32.mrb[0].mxu0
        %v954 = vadd.f32 0.0, %v953
        %v955 = vpop.f32.mrb[0].mxu0
        %v956 = vpop.f32.mrb[0].mxu0
        %v957 = vadd.f32 0.0, %v956
        %v958 = vpop.f32.mrb[0].mxu0
        %959 = vdwg.mxu0
        %v960 = vadd.f32 %v572, %v834
        %v961 = vadd.f32 %v575, %v837
        %v962 = vadd.f32 %v580, %v842
        %v963 = vadd.f32 %v583, %v845
        %v964 = vadd.f32 %v588, %v850
        %v965 = vadd.f32 %v591, %v853
        %v966 = vadd.f32 %v596, %v858
        %v967 = vadd.f32 %v599, %v861
        %v968 = vadd.f32 %v604, %v866
        %v969 = vadd.f32 %v607, %v869
        %v970 = vadd.f32 %v612, %v874
        %v971 = vadd.f32 %v615, %v877
        %v972 = vadd.f32 %v620, %v882
        %v973 = vadd.f32 %v623, %v885
        %v974 = vadd.f32 %v628, %v890
        %v975 = vadd.f32 %v631, %v893
        %v976 = vadd.f32 %v636, %v898
        %v977 = vadd.f32 %v639, %v901
        %v978 = vadd.f32 %v644, %v906
        %v979 = vadd.f32 %v647, %v909
        %v980 = vadd.f32 %v652, %v914
        %v981 = vadd.f32 %v655, %v917
        %v982 = vadd.f32 %v660, %v922
        %v983 = vadd.f32 %v663, %v925
        %v984 = vadd.f32 %v668, %v930
        %v985 = vadd.f32 %v671, %v933
        %v986 = vadd.f32 %v676, %v938
        %v987 = vadd.f32 %v679, %v941
        %v988 = vadd.f32 %v684, %v946
        %v989 = vadd.f32 %v687, %v949
        %v990 = vadd.f32 %v692, %v954
        %v991 = vadd.f32 %v695, %v957
        %s992 = scalar_lea.vmem %s168, 24
        %v993 = vld [vmem:[%s992] sm:$0xff]
        %v994 = vld [vmem:[%s992 + $0x8] sm:$0xff]
        %v995 = vld [vmem:[%s992 + $0x18] sm:$0xff]
        %v996 = vld [vmem:[%s992 + $0x20] sm:$0xff]
        %v997 = vld [vmem:[%s992 + $0x30] sm:$0xff]
        %v998 = vld [vmem:[%s992 + $0x38] sm:$0xff]
        %v999 = vld [vmem:[%s992 + $0x48] sm:$0xff]
        %v1000 = vld [vmem:[%s992 + $0x50] sm:$0xff]
        %v1001 = vld [vmem:[%s992 + $0x60] sm:$0xff]
        %v1002 = vld [vmem:[%s992 + $0x68] sm:$0xff]
        %v1003 = vld [vmem:[%s992 + $0x78] sm:$0xff]
        %v1004 = vld [vmem:[%s992 + $0x80] sm:$0xff]
        %v1005 = vld [vmem:[%s992 + $0x90] sm:$0xff]
        %v1006 = vld [vmem:[%s992 + $0x98] sm:$0xff]
        %v1007 = vld [vmem:[%s992 + $0xa8] sm:$0xff]
        %v1008 = vld [vmem:[%s992 + $0xb0] sm:$0xff]
        %v1009 = vld [vmem:[%s992 + $0xc0] sm:$0xff]
        %v1010 = vld [vmem:[%s992 + $0xc8] sm:$0xff]
        %v1011 = vld [vmem:[%s992 + $0xd8] sm:$0xff]
        %v1012 = vld [vmem:[%s992 + $0xe0] sm:$0xff]
        %v1013 = vld [vmem:[%s992 + $0xf0] sm:$0xff]
        %v1014 = vld [vmem:[%s992 + $0xf8] sm:$0xff]
        %v1015 = vld [vmem:[%s992 + $0x108] sm:$0xff]
        %v1016 = vld [vmem:[%s992 + $0x110] sm:$0xff]
        %v1017 = vld [vmem:[%s992 + $0x120] sm:$0xff]
        %v1018 = vld [vmem:[%s992 + $0x128] sm:$0xff]
        %v1019 = vld [vmem:[%s992 + $0x138] sm:$0xff]
        %v1020 = vld [vmem:[%s992 + $0x140] sm:$0xff]
        %v1021 = vld [vmem:[%s992 + $0x150] sm:$0xff]
        %v1022 = vld [vmem:[%s992 + $0x158] sm:$0xff]
        %v1023 = vld [vmem:[%s992 + $0x168] sm:$0xff]
        %v1024 = vld [vmem:[%s992 + $0x170] sm:$0xff]
        %v1025 = vpack.c.bf16 %v994, %v993
        %v1026 = vpack.c.bf16 %v996, %v995
        %v1027 = vpack.c.bf16 %v998, %v997
        %v1028 = vpack.c.bf16 %v1000, %v999
        %v1029 = vpack.c.bf16 %v1002, %v1001
        %v1030 = vpack.c.bf16 %v1004, %v1003
        %v1031 = vpack.c.bf16 %v1006, %v1005
        %v1032 = vpack.c.bf16 %v1008, %v1007
        %v1033 = vpack.c.bf16 %v1010, %v1009
        %v1034 = vpack.c.bf16 %v1012, %v1011
        %v1035 = vpack.c.bf16 %v1014, %v1013
        %v1036 = vpack.c.bf16 %v1016, %v1015
        %v1037 = vpack.c.bf16 %v1018, %v1017
        %v1038 = vpack.c.bf16 %v1020, %v1019
        %v1039 = vpack.c.bf16 %v1022, %v1021
        %v1040 = vpack.c.bf16 %v1024, %v1023
        %s1041 = scalar_lea.vmem %s1, 6
        %v1042 = vld [vmem:[%s1041] sm:$0x3]
        %v1044 = vsel %vm269, %v1025, 0
        %v1047 = vsel %vm269, %v1026, 0
        %v1050 = vsel %vm269, %v1027, 0
        %v1053 = vsel %vm269, %v1028, 0
        %v1056 = vsel %vm269, %v1029, 0
        %v1059 = vsel %vm269, %v1030, 0
        %v1062 = vsel %vm269, %v1031, 0
        %v1065 = vsel %vm269, %v1032, 0
        %v1068 = vsel %vm269, %v1033, 0
        %v1071 = vsel %vm269, %v1034, 0
        %v1074 = vsel %vm269, %v1035, 0
        %v1077 = vsel %vm269, %v1036, 0
        %v1080 = vsel %vm269, %v1037, 0
        %v1083 = vsel %vm269, %v1038, 0
        %v1086 = vsel %vm269, %v1039, 0
        %v1089 = vsel %vm269, %v1040, 0
        %v1092 = vand.u32 %v1042, %v321
        %1094 = vmatprep.subr.bf16.mxu0 0
        %1095 = vmatpush1.bf16.msra.mxu0 %v1092
        %1096 = vmatprep.subr.bf16.mxu0 0
        %1097 = vmatpush1.bf16.msra.mxu0 0
        %1098 = vmatprep.subr.bf16.mxu0 0
        %1099 = vmatpush1.bf16.msra.mxu0 0
        %1100 = vmatprep.subr.bf16.mxu0 0
        %1101 = vmatpush1.bf16.msra.mxu0 0
        %1102 = vmatprep.subr.bf16.mxu0 0
        %1103 = vmatpush1.bf16.msra.mxu0 0
        %1104 = vmatprep.subr.bf16.mxu0 0
        %1105 = vmatpush1.bf16.msra.mxu0 0
        %1106 = vmatprep.subr.bf16.mxu0 0
        %1107 = vmatpush1.bf16.msra.mxu0 0
        %1108 = vmatprep.subr.bf16.mxu0 0
        %1109 = vmatpush1.bf16.msra.mxu0 0
        %1110 = vmatprep.subr.bf16.mxu0 0
        %1111 = vmatpush1.bf16.msra.mxu0 0
        %1112 = vmatprep.subr.bf16.mxu0 0
        %1113 = vmatpush1.bf16.msra.mxu0 0
        %1114 = vmatprep.subr.bf16.mxu0 0
        %1115 = vmatpush1.bf16.msra.mxu0 0
        %1116 = vmatprep.subr.bf16.mxu0 0
        %1117 = vmatpush1.bf16.msra.mxu0 0
        %1118 = vmatprep.subr.bf16.mxu0 0
        %1119 = vmatpush1.bf16.msra.mxu0 0
        %1120 = vmatprep.subr.bf16.mxu0 0
        %1121 = vmatpush1.bf16.msra.mxu0 0
        %1122 = vmatprep.subr.bf16.mxu0 0
        %1123 = vmatpush1.bf16.msra.mxu0 0
        %1124 = vmatprep.subr.bf16.mxu0 0
        %1125 = vmatpush1.bf16.msra.mxu0 0
        %1126 = vmatprep.mubr.bf16.mxu0 0
        %1127 = vmatmul.mubr.bf16.gmra.mrb[0].mxu0 %v1044
        %v1128 = vpop.f32.mrb[0].mxu0
        %v1129 = vadd.f32 0.0, %v1128
        %v1130 = vpop.f32.mrb[0].mxu0
        %v1131 = vpop.f32.mrb[0].mxu0
        %v1132 = vadd.f32 0.0, %v1131
        %v1133 = vpop.f32.mrb[0].mxu0
        %1134 = vmatprep.mubr.bf16.mxu0 0
        %1135 = vmatmul.mubr.bf16.gmra.mrb[0].mxu0 %v1047
        %v1136 = vpop.f32.mrb[0].mxu0
        %v1137 = vadd.f32 0.0, %v1136
        %v1138 = vpop.f32.mrb[0].mxu0
        %v1139 = vpop.f32.mrb[0].mxu0
        %v1140 = vadd.f32 0.0, %v1139
        %v1141 = vpop.f32.mrb[0].mxu0
        %1142 = vmatprep.mubr.bf16.mxu0 0
        %1143 = vmatmul.mubr.bf16.gmra.mrb[0].mxu0 %v1050
        %v1144 = vpop.f32.mrb[0].mxu0
        %v1145 = vadd.f32 0.0, %v1144
        %v1146 = vpop.f32.mrb[0].mxu0
        %v1147 = vpop.f32.mrb[0].mxu0
        %v1148 = vadd.f32 0.0, %v1147
        %v1149 = vpop.f32.mrb[0].mxu0
        %1150 = vmatprep.mubr.bf16.mxu0 0
        %1151 = vmatmul.mubr.bf16.gmra.mrb[0].mxu0 %v1053
        %v1152 = vpop.f32.mrb[0].mxu0
        %v1153 = vadd.f32 0.0, %v1152
        %v1154 = vpop.f32.mrb[0].mxu0
        %v1155 = vpop.f32.mrb[0].mxu0
        %v1156 = vadd.f32 0.0, %v1155
        %v1157 = vpop.f32.mrb[0].mxu0
        %1158 = vmatprep.mubr.bf16.mxu0 0
        %1159 = vmatmul.mubr.bf16.gmra.mrb[0].mxu0 %v1056
        %v1160 = vpop.f32.mrb[0].mxu0
        %v1161 = vadd.f32 0.0, %v1160
        %v1162 = vpop.f32.mrb[0].mxu0
        %v1163 = vpop.f32.mrb[0].mxu0
        %v1164 = vadd.f32 0.0, %v1163
        %v1165 = vpop.f32.mrb[0].mxu0
        %1166 = vmatprep.mubr.bf16.mxu0 0
        %1167 = vmatmul.mubr.bf16.gmra.mrb[0].mxu0 %v1059
        %v1168 = vpop.f32.mrb[0].mxu0
        %v1169 = vadd.f32 0.0, %v1168
        %v1170 = vpop.f32.mrb[0].mxu0
        %v1171 = vpop.f32.mrb[0].mxu0
        %v1172 = vadd.f32 0.0, %v1171
        %v1173 = vpop.f32.mrb[0].mxu0
        %1174 = vmatprep.mubr.bf16.mxu0 0
        %1175 = vmatmul.mubr.bf16.gmra.mrb[0].mxu0 %v1062
        %v1176 = vpop.f32.mrb[0].mxu0
        %v1177 = vadd.f32 0.0, %v1176
        %v1178 = vpop.f32.mrb[0].mxu0
        %v1179 = vpop.f32.mrb[0].mxu0
        %v1180 = vadd.f32 0.0, %v1179
        %v1181 = vpop.f32.mrb[0].mxu0
        %1182 = vmatprep.mubr.bf16.mxu0 0
        %1183 = vmatmul.mubr.bf16.gmra.mrb[0].mxu0 %v1065
        %v1184 = vpop.f32.mrb[0].mxu0
        %v1185 = vadd.f32 0.0, %v1184
        %v1186 = vpop.f32.mrb[0].mxu0
        %v1187 = vpop.f32.mrb[0].mxu0
        %v1188 = vadd.f32 0.0, %v1187
        %v1189 = vpop.f32.mrb[0].mxu0
        %1190 = vmatprep.mubr.bf16.mxu0 0
        %1191 = vmatmul.mubr.bf16.gmra.mrb[0].mxu0 %v1068
        %v1192 = vpop.f32.mrb[0].mxu0
        %v1193 = vadd.f32 0.0, %v1192
        %v1194 = vpop.f32.mrb[0].mxu0
        %v1195 = vpop.f32.mrb[0].mxu0
        %v1196 = vadd.f32 0.0, %v1195
        %v1197 = vpop.f32.mrb[0].mxu0
        %1198 = vmatprep.mubr.bf16.mxu0 0
        %1199 = vmatmul.mubr.bf16.gmra.mrb[0].mxu0 %v1071
        %v1200 = vpop.f32.mrb[0].mxu0
        %v1201 = vadd.f32 0.0, %v1200
        %v1202 = vpop.f32.mrb[0].mxu0
        %v1203 = vpop.f32.mrb[0].mxu0
        %v1204 = vadd.f32 0.0, %v1203
        %v1205 = vpop.f32.mrb[0].mxu0
        %1206 = vmatprep.mubr.bf16.mxu0 0
        %1207 = vmatmul.mubr.bf16.gmra.mrb[0].mxu0 %v1074
        %v1208 = vpop.f32.mrb[0].mxu0
        %v1209 = vadd.f32 0.0, %v1208
        %v1210 = vpop.f32.mrb[0].mxu0
        %v1211 = vpop.f32.mrb[0].mxu0
        %v1212 = vadd.f32 0.0, %v1211
        %v1213 = vpop.f32.mrb[0].mxu0
        %1214 = vmatprep.mubr.bf16.mxu0 0
        %1215 = vmatmul.mubr.bf16.gmra.mrb[0].mxu0 %v1077
        %v1216 = vpop.f32.mrb[0].mxu0
        %v1217 = vadd.f32 0.0, %v1216
        %v1218 = vpop.f32.mrb[0].mxu0
        %v1219 = vpop.f32.mrb[0].mxu0
        %v1220 = vadd.f32 0.0, %v1219
        %v1221 = vpop.f32.mrb[0].mxu0
        %1222 = vmatprep.mubr.bf16.mxu0 0
        %1223 = vmatmul.mubr.bf16.gmra.mrb[0].mxu0 %v1080
        %v1224 = vpop.f32.mrb[0].mxu0
        %v1225 = vadd.f32 0.0, %v1224
        %v1226 = vpop.f32.mrb[0].mxu0
        %v1227 = vpop.f32.mrb[0].mxu0
        %v1228 = vadd.f32 0.0, %v1227
        %v1229 = vpop.f32.mrb[0].mxu0
        %1230 = vmatprep.mubr.bf16.mxu0 0
        %1231 = vmatmul.mubr.bf16.gmra.mrb[0].mxu0 %v1083
        %v1232 = vpop.f32.mrb[0].mxu0
        %v1233 = vadd.f32 0.0, %v1232
        %v1234 = vpop.f32.mrb[0].mxu0
        %v1235 = vpop.f32.mrb[0].mxu0
        %v1236 = vadd.f32 0.0, %v1235
        %v1237 = vpop.f32.mrb[0].mxu0
        %1238 = vmatprep.mubr.bf16.mxu0 0
        %1239 = vmatmul.mubr.bf16.gmra.mrb[0].mxu0 %v1086
        %v1240 = vpop.f32.mrb[0].mxu0
        %v1241 = vadd.f32 0.0, %v1240
        %v1242 = vpop.f32.mrb[0].mxu0
        %v1243 = vpop.f32.mrb[0].mxu0
        %v1244 = vadd.f32 0.0, %v1243
        %v1245 = vpop.f32.mrb[0].mxu0
        %1246 = vmatprep.mubr.bf16.mxu0 0
        %1247 = vmatmul.mubr.bf16.gmra.mrb[0].mxu0 %v1089
        %v1248 = vpop.f32.mrb[0].mxu0
        %v1249 = vadd.f32 0.0, %v1248
        %v1250 = vpop.f32.mrb[0].mxu0
        %v1251 = vpop.f32.mrb[0].mxu0
        %v1252 = vadd.f32 0.0, %v1251
        %v1253 = vpop.f32.mrb[0].mxu0
        %1254 = vdwg.mxu0
        %v1255 = vadd.f32 %v960, %v1129
        %v1256 = vadd.f32 %v961, %v1132
        %v1257 = vadd.f32 %v962, %v1137
        %v1258 = vadd.f32 %v963, %v1140
        %v1259 = vadd.f32 %v964, %v1145
        %v1260 = vadd.f32 %v965, %v1148
        %v1261 = vadd.f32 %v966, %v1153
        %v1262 = vadd.f32 %v967, %v1156
        %v1263 = vadd.f32 %v968, %v1161
        %v1264 = vadd.f32 %v969, %v1164
        %v1265 = vadd.f32 %v970, %v1169
        %v1266 = vadd.f32 %v971, %v1172
        %v1267 = vadd.f32 %v972, %v1177
        %v1268 = vadd.f32 %v973, %v1180
        %v1269 = vadd.f32 %v974, %v1185
        %v1270 = vadd.f32 %v975, %v1188
        %v1271 = vadd.f32 %v976, %v1193
        %v1272 = vadd.f32 %v977, %v1196
        %v1273 = vadd.f32 %v978, %v1201
        %v1274 = vadd.f32 %v979, %v1204
        %v1275 = vadd.f32 %v980, %v1209
        %v1276 = vadd.f32 %v981, %v1212
        %v1277 = vadd.f32 %v982, %v1217
        %v1278 = vadd.f32 %v983, %v1220
        %v1279 = vadd.f32 %v984, %v1225
        %v1280 = vadd.f32 %v985, %v1228
        %v1281 = vadd.f32 %v986, %v1233
        %v1282 = vadd.f32 %v987, %v1236
        %v1283 = vadd.f32 %v988, %v1241
        %v1284 = vadd.f32 %v989, %v1244
        %v1285 = vadd.f32 %v990, %v1249
        %v1286 = vadd.f32 %v991, %v1252
        %v1287 = vld [vmem:[%s992 + $0x1] sm:$0xff]
        %v1288 = vld [vmem:[%s992 + $0x9] sm:$0xff]
        %v1289 = vld [vmem:[%s992 + $0x19] sm:$0xff]
        %v1290 = vld [vmem:[%s992 + $0x21] sm:$0xff]
        %v1291 = vld [vmem:[%s992 + $0x31] sm:$0xff]
        %v1292 = vld [vmem:[%s992 + $0x39] sm:$0xff]
        %v1293 = vld [vmem:[%s992 + $0x49] sm:$0xff]
        %v1294 = vld [vmem:[%s992 + $0x51] sm:$0xff]
        %v1295 = vld [vmem:[%s992 + $0x61] sm:$0xff]
        %v1296 = vld [vmem:[%s992 + $0x69] sm:$0xff]
        %v1297 = vld [vmem:[%s992 + $0x79] sm:$0xff]
        %v1298 = vld [vmem:[%s992 + $0x81] sm:$0xff]
        %v1299 = vld [vmem:[%s992 + $0x91] sm:$0xff]
        %v1300 = vld [vmem:[%s992 + $0x99] sm:$0xff]
        %v1301 = vld [vmem:[%s992 + $0xa9] sm:$0xff]
        %v1302 = vld [vmem:[%s992 + $0xb1] sm:$0xff]
        %v1303 = vld [vmem:[%s992 + $0xc1] sm:$0xff]
        %v1304 = vld [vmem:[%s992 + $0xc9] sm:$0xff]
        %v1305 = vld [vmem:[%s992 + $0xd9] sm:$0xff]
        %v1306 = vld [vmem:[%s992 + $0xe1] sm:$0xff]
        %v1307 = vld [vmem:[%s992 + $0xf1] sm:$0xff]
        %v1308 = vld [vmem:[%s992 + $0xf9] sm:$0xff]
        %v1309 = vld [vmem:[%s992 + $0x109] sm:$0xff]
        %v1310 = vld [vmem:[%s992 + $0x111] sm:$0xff]
        %v1311 = vld [vmem:[%s992 + $0x121] sm:$0xff]
        %v1312 = vld [vmem:[%s992 + $0x129] sm:$0xff]
        %v1313 = vld [vmem:[%s992 + $0x139] sm:$0xff]
        %v1314 = vld [vmem:[%s992 + $0x141] sm:$0xff]
        %v1315 = vld [vmem:[%s992 + $0x151] sm:$0xff]
        %v1316 = vld [vmem:[%s992 + $0x159] sm:$0xff]
        %v1317 = vld [vmem:[%s992 + $0x169] sm:$0xff]
        %v1318 = vld [vmem:[%s992 + $0x171] sm:$0xff]
        %v1319 = vpack.c.bf16 %v1288, %v1287
        %v1320 = vpack.c.bf16 %v1290, %v1289
        %v1321 = vpack.c.bf16 %v1292, %v1291
        %v1322 = vpack.c.bf16 %v1294, %v1293
        %v1323 = vpack.c.bf16 %v1296, %v1295
        %v1324 = vpack.c.bf16 %v1298, %v1297
        %v1325 = vpack.c.bf16 %v1300, %v1299
        %v1326 = vpack.c.bf16 %v1302, %v1301
        %v1327 = vpack.c.bf16 %v1304, %v1303
        %v1328 = vpack.c.bf16 %v1306, %v1305
        %v1329 = vpack.c.bf16 %v1308, %v1307
        %v1330 = vpack.c.bf16 %v1310, %v1309
        %v1331 = vpack.c.bf16 %v1312, %v1311
        %v1332 = vpack.c.bf16 %v1314, %v1313
        %v1333 = vpack.c.bf16 %v1316, %v1315
        %v1334 = vpack.c.bf16 %v1318, %v1317
        %s1335 = scalar_lea.vmem %s1, 8
        %v1336 = vld [vmem:[%s1335] sm:$0x3]
        %v1338 = vsel %vm269, %v1319, 0
        %v1341 = vsel %vm269, %v1320, 0
        %v1344 = vsel %vm269, %v1321, 0
        %v1347 = vsel %vm269, %v1322, 0
        %v1350 = vsel %vm269, %v1323, 0
        %v1353 = vsel %vm269, %v1324, 0
        %v1356 = vsel %vm269, %v1325, 0
        %v1359 = vsel %vm269, %v1326, 0
        %v1362 = vsel %vm269, %v1327, 0
        %v1365 = vsel %vm269, %v1328, 0
        %v1368 = vsel %vm269, %v1329, 0
        %v1371 = vsel %vm269, %v1330, 0
        %v1374 = vsel %vm269, %v1331, 0
        %v1377 = vsel %vm269, %v1332, 0
        %v1380 = vsel %vm269, %v1333, 0
        %v1383 = vsel %vm269, %v1334, 0
        %v1386 = vand.u32 %v1336, %v321
        %1388 = vmatprep.subr.bf16.mxu0 0
        %1389 = vmatpush1.bf16.msra.mxu0 %v1386
        %1390 = vmatprep.subr.bf16.mxu0 0
        %1391 = vmatpush1.bf16.msra.mxu0 0
        %1392 = vmatprep.subr.bf16.mxu0 0
        %1393 = vmatpush1.bf16.msra.mxu0 0
        %1394 = vmatprep.subr.bf16.mxu0 0
        %1395 = vmatpush1.bf16.msra.mxu0 0
        %1396 = vmatprep.subr.bf16.mxu0 0
        %1397 = vmatpush1.bf16.msra.mxu0 0
        %1398 = vmatprep.subr.bf16.mxu0 0
        %1399 = vmatpush1.bf16.msra.mxu0 0
        %1400 = vmatprep.subr.bf16.mxu0 0
        %1401 = vmatpush1.bf16.msra.mxu0 0
        %1402 = vmatprep.subr.bf16.mxu0 0
        %1403 = vmatpush1.bf16.msra.mxu0 0
        %1404 = vmatprep.subr.bf16.mxu0 0
        %1405 = vmatpush1.bf16.msra.mxu0 0
        %1406 = vmatprep.subr.bf16.mxu0 0
        %1407 = vmatpush1.bf16.msra.mxu0 0
        %1408 = vmatprep.subr.bf16.mxu0 0
        %1409 = vmatpush1.bf16.msra.mxu0 0
        %1410 = vmatprep.subr.bf16.mxu0 0
        %1411 = vmatpush1.bf16.msra.mxu0 0
        %1412 = vmatprep.subr.bf16.mxu0 0
        %1413 = vmatpush1.bf16.msra.mxu0 0
        %1414 = vmatprep.subr.bf16.mxu0 0
        %1415 = vmatpush1.bf16.msra.mxu0 0
        %1416 = vmatprep.subr.bf16.mxu0 0
        %1417 = vmatpush1.bf16.msra.mxu0 0
        %1418 = vmatprep.subr.bf16.mxu0 0
        %1419 = vmatpush1.bf16.msra.mxu0 0
        %1420 = vmatprep.mubr.bf16.mxu0 0
        %1421 = vmatmul.mubr.bf16.gmra.mrb[0].mxu0 %v1338
        %v1422 = vpop.f32.mrb[0].mxu0
        %v1423 = vadd.f32 0.0, %v1422
        %v1424 = vpop.f32.mrb[0].mxu0
        %v1425 = vpop.f32.mrb[0].mxu0
        %v1426 = vadd.f32 0.0, %v1425
        %v1427 = vpop.f32.mrb[0].mxu0
        %1428 = vmatprep.mubr.bf16.mxu0 0
        %1429 = vmatmul.mubr.bf16.gmra.mrb[0].mxu0 %v1341
        %v1430 = vpop.f32.mrb[0].mxu0
        %v1431 = vadd.f32 0.0, %v1430
        %v1432 = vpop.f32.mrb[0].mxu0
        %v1433 = vpop.f32.mrb[0].mxu0
        %v1434 = vadd.f32 0.0, %v1433
        %v1435 = vpop.f32.mrb[0].mxu0
        %1436 = vmatprep.mubr.bf16.mxu0 0
        %1437 = vmatmul.mubr.bf16.gmra.mrb[0].mxu0 %v1344
        %v1438 = vpop.f32.mrb[0].mxu0
        %v1439 = vadd.f32 0.0, %v1438
        %v1440 = vpop.f32.mrb[0].mxu0
        %v1441 = vpop.f32.mrb[0].mxu0
        %v1442 = vadd.f32 0.0, %v1441
        %v1443 = vpop.f32.mrb[0].mxu0
        %1444 = vmatprep.mubr.bf16.mxu0 0
        %1445 = vmatmul.mubr.bf16.gmra.mrb[0].mxu0 %v1347
        %v1446 = vpop.f32.mrb[0].mxu0
        %v1447 = vadd.f32 0.0, %v1446
        %v1448 = vpop.f32.mrb[0].mxu0
        %v1449 = vpop.f32.mrb[0].mxu0
        %v1450 = vadd.f32 0.0, %v1449
        %v1451 = vpop.f32.mrb[0].mxu0
        %1452 = vmatprep.mubr.bf16.mxu0 0
        %1453 = vmatmul.mubr.bf16.gmra.mrb[0].mxu0 %v1350
        %v1454 = vpop.f32.mrb[0].mxu0
        %v1455 = vadd.f32 0.0, %v1454
        %v1456 = vpop.f32.mrb[0].mxu0
        %v1457 = vpop.f32.mrb[0].mxu0
        %v1458 = vadd.f32 0.0, %v1457
        %v1459 = vpop.f32.mrb[0].mxu0
        %1460 = vmatprep.mubr.bf16.mxu0 0
        %1461 = vmatmul.mubr.bf16.gmra.mrb[0].mxu0 %v1353
        %v1462 = vpop.f32.mrb[0].mxu0
        %v1463 = vadd.f32 0.0, %v1462
        %v1464 = vpop.f32.mrb[0].mxu0
        %v1465 = vpop.f32.mrb[0].mxu0
        %v1466 = vadd.f32 0.0, %v1465
        %v1467 = vpop.f32.mrb[0].mxu0
        %1468 = vmatprep.mubr.bf16.mxu0 0
        %1469 = vmatmul.mubr.bf16.gmra.mrb[0].mxu0 %v1356
        %v1470 = vpop.f32.mrb[0].mxu0
        %v1471 = vadd.f32 0.0, %v1470
        %v1472 = vpop.f32.mrb[0].mxu0
        %v1473 = vpop.f32.mrb[0].mxu0
        %v1474 = vadd.f32 0.0, %v1473
        %v1475 = vpop.f32.mrb[0].mxu0
        %1476 = vmatprep.mubr.bf16.mxu0 0
        %1477 = vmatmul.mubr.bf16.gmra.mrb[0].mxu0 %v1359
        %v1478 = vpop.f32.mrb[0].mxu0
        %v1479 = vadd.f32 0.0, %v1478
        %v1480 = vpop.f32.mrb[0].mxu0
        %v1481 = vpop.f32.mrb[0].mxu0
        %v1482 = vadd.f32 0.0, %v1481
        %v1483 = vpop.f32.mrb[0].mxu0
        %1484 = vmatprep.mubr.bf16.mxu0 0
        %1485 = vmatmul.mubr.bf16.gmra.mrb[0].mxu0 %v1362
        %v1486 = vpop.f32.mrb[0].mxu0
        %v1487 = vadd.f32 0.0, %v1486
        %v1488 = vpop.f32.mrb[0].mxu0
        %v1489 = vpop.f32.mrb[0].mxu0
        %v1490 = vadd.f32 0.0, %v1489
        %v1491 = vpop.f32.mrb[0].mxu0
        %1492 = vmatprep.mubr.bf16.mxu0 0
        %1493 = vmatmul.mubr.bf16.gmra.mrb[0].mxu0 %v1365
        %v1494 = vpop.f32.mrb[0].mxu0
        %v1495 = vadd.f32 0.0, %v1494
        %v1496 = vpop.f32.mrb[0].mxu0
        %v1497 = vpop.f32.mrb[0].mxu0
        %v1498 = vadd.f32 0.0, %v1497
        %v1499 = vpop.f32.mrb[0].mxu0
        %1500 = vmatprep.mubr.bf16.mxu0 0
        %1501 = vmatmul.mubr.bf16.gmra.mrb[0].mxu0 %v1368
        %v1502 = vpop.f32.mrb[0].mxu0
        %v1503 = vadd.f32 0.0, %v1502
        %v1504 = vpop.f32.mrb[0].mxu0
        %v1505 = vpop.f32.mrb[0].mxu0
        %v1506 = vadd.f32 0.0, %v1505
        %v1507 = vpop.f32.mrb[0].mxu0
        %1508 = vmatprep.mubr.bf16.mxu0 0
        %1509 = vmatmul.mubr.bf16.gmra.mrb[0].mxu0 %v1371
        %v1510 = vpop.f32.mrb[0].mxu0
        %v1511 = vadd.f32 0.0, %v1510
        %v1512 = vpop.f32.mrb[0].mxu0
        %v1513 = vpop.f32.mrb[0].mxu0
        %v1514 = vadd.f32 0.0, %v1513
        %v1515 = vpop.f32.mrb[0].mxu0
        %1516 = vmatprep.mubr.bf16.mxu0 0
        %1517 = vmatmul.mubr.bf16.gmra.mrb[0].mxu0 %v1374
        %v1518 = vpop.f32.mrb[0].mxu0
        %v1519 = vadd.f32 0.0, %v1518
        %v1520 = vpop.f32.mrb[0].mxu0
        %v1521 = vpop.f32.mrb[0].mxu0
        %v1522 = vadd.f32 0.0, %v1521
        %v1523 = vpop.f32.mrb[0].mxu0
        %1524 = vmatprep.mubr.bf16.mxu0 0
        %1525 = vmatmul.mubr.bf16.gmra.mrb[0].mxu0 %v1377
        %v1526 = vpop.f32.mrb[0].mxu0
        %v1527 = vadd.f32 0.0, %v1526
        %v1528 = vpop.f32.mrb[0].mxu0
        %v1529 = vpop.f32.mrb[0].mxu0
        %v1530 = vadd.f32 0.0, %v1529
        %v1531 = vpop.f32.mrb[0].mxu0
        %1532 = vmatprep.mubr.bf16.mxu0 0
        %1533 = vmatmul.mubr.bf16.gmra.mrb[0].mxu0 %v1380
        %v1534 = vpop.f32.mrb[0].mxu0
        %v1535 = vadd.f32 0.0, %v1534
        %v1536 = vpop.f32.mrb[0].mxu0
        %v1537 = vpop.f32.mrb[0].mxu0
        %v1538 = vadd.f32 0.0, %v1537
        %v1539 = vpop.f32.mrb[0].mxu0
        %1540 = vmatprep.mubr.bf16.mxu0 0
        %1541 = vmatmul.mubr.bf16.gmra.mrb[0].mxu0 %v1383
        %v1542 = vpop.f32.mrb[0].mxu0
        %v1543 = vadd.f32 0.0, %v1542
        %v1544 = vpop.f32.mrb[0].mxu0
        %v1545 = vpop.f32.mrb[0].mxu0
        %v1546 = vadd.f32 0.0, %v1545
        %v1547 = vpop.f32.mrb[0].mxu0
        %1548 = vdwg.mxu0
        %v1549 = vadd.f32 %v1255, %v1423
        %v1550 = vadd.f32 %v1256, %v1426
        %v1551 = vadd.f32 %v1257, %v1431
        %v1552 = vadd.f32 %v1258, %v1434
        %v1553 = vadd.f32 %v1259, %v1439
        %v1554 = vadd.f32 %v1260, %v1442
        %v1555 = vadd.f32 %v1261, %v1447
        %v1556 = vadd.f32 %v1262, %v1450
        %v1557 = vadd.f32 %v1263, %v1455
        %v1558 = vadd.f32 %v1264, %v1458
        %v1559 = vadd.f32 %v1265, %v1463
        %v1560 = vadd.f32 %v1266, %v1466
        %v1561 = vadd.f32 %v1267, %v1471
        %v1562 = vadd.f32 %v1268, %v1474
        %v1563 = vadd.f32 %v1269, %v1479
        %v1564 = vadd.f32 %v1270, %v1482
        %v1565 = vadd.f32 %v1271, %v1487
        %v1566 = vadd.f32 %v1272, %v1490
        %v1567 = vadd.f32 %v1273, %v1495
        %v1568 = vadd.f32 %v1274, %v1498
        %v1569 = vadd.f32 %v1275, %v1503
        %v1570 = vadd.f32 %v1276, %v1506
        %v1571 = vadd.f32 %v1277, %v1511
        %v1572 = vadd.f32 %v1278, %v1514
        %v1573 = vadd.f32 %v1279, %v1519
        %v1574 = vadd.f32 %v1280, %v1522
        %v1575 = vadd.f32 %v1281, %v1527
        %v1576 = vadd.f32 %v1282, %v1530
        %v1577 = vadd.f32 %v1283, %v1535
        %v1578 = vadd.f32 %v1284, %v1538
        %v1579 = vadd.f32 %v1285, %v1543
        %v1580 = vadd.f32 %v1286, %v1546
        %v1581 = vld [vmem:[%s992 + $0x2] sm:$0xff]
        %v1582 = vld [vmem:[%s992 + $0xa] sm:$0xff]
        %v1583 = vld [vmem:[%s992 + $0x1a] sm:$0xff]
        %v1584 = vld [vmem:[%s992 + $0x22] sm:$0xff]
        %v1585 = vld [vmem:[%s992 + $0x32] sm:$0xff]
        %v1586 = vld [vmem:[%s992 + $0x3a] sm:$0xff]
        %v1587 = vld [vmem:[%s992 + $0x4a] sm:$0xff]
        %v1588 = vld [vmem:[%s992 + $0x52] sm:$0xff]
        %v1589 = vld [vmem:[%s992 + $0x62] sm:$0xff]
        %v1590 = vld [vmem:[%s992 + $0x6a] sm:$0xff]
        %v1591 = vld [vmem:[%s992 + $0x7a] sm:$0xff]
        %v1592 = vld [vmem:[%s992 + $0x82] sm:$0xff]
        %v1593 = vld [vmem:[%s992 + $0x92] sm:$0xff]
        %v1594 = vld [vmem:[%s992 + $0x9a] sm:$0xff]
        %v1595 = vld [vmem:[%s992 + $0xaa] sm:$0xff]
        %v1596 = vld [vmem:[%s992 + $0xb2] sm:$0xff]
        %v1597 = vld [vmem:[%s992 + $0xc2] sm:$0xff]
        %v1598 = vld [vmem:[%s992 + $0xca] sm:$0xff]
        %v1599 = vld [vmem:[%s992 + $0xda] sm:$0xff]
        %v1600 = vld [vmem:[%s992 + $0xe2] sm:$0xff]
        %v1601 = vld [vmem:[%s992 + $0xf2] sm:$0xff]
        %v1602 = vld [vmem:[%s992 + $0xfa] sm:$0xff]
        %v1603 = vld [vmem:[%s992 + $0x10a] sm:$0xff]
        %v1604 = vld [vmem:[%s992 + $0x112] sm:$0xff]
        %v1605 = vld [vmem:[%s992 + $0x122] sm:$0xff]
        %v1606 = vld [vmem:[%s992 + $0x12a] sm:$0xff]
        %v1607 = vld [vmem:[%s992 + $0x13a] sm:$0xff]
        %v1608 = vld [vmem:[%s992 + $0x142] sm:$0xff]
        %v1609 = vld [vmem:[%s992 + $0x152] sm:$0xff]
        %v1610 = vld [vmem:[%s992 + $0x15a] sm:$0xff]
        %v1611 = vld [vmem:[%s992 + $0x16a] sm:$0xff]
        %v1612 = vld [vmem:[%s992 + $0x172] sm:$0xff]
        %v1613 = vpack.c.bf16 %v1582, %v1581
        %v1614 = vpack.c.bf16 %v1584, %v1583
        %v1615 = vpack.c.bf16 %v1586, %v1585
        %v1616 = vpack.c.bf16 %v1588, %v1587
        %v1617 = vpack.c.bf16 %v1590, %v1589
        %v1618 = vpack.c.bf16 %v1592, %v1591
        %v1619 = vpack.c.bf16 %v1594, %v1593
        %v1620 = vpack.c.bf16 %v1596, %v1595
        %v1621 = vpack.c.bf16 %v1598, %v1597
        %v1622 = vpack.c.bf16 %v1600, %v1599
        %v1623 = vpack.c.bf16 %v1602, %v1601
        %v1624 = vpack.c.bf16 %v1604, %v1603
        %v1625 = vpack.c.bf16 %v1606, %v1605
        %v1626 = vpack.c.bf16 %v1608, %v1607
        %v1627 = vpack.c.bf16 %v1610, %v1609
        %v1628 = vpack.c.bf16 %v1612, %v1611
        %s1629 = scalar_lea.vmem %s1, 10
        %v1630 = vld [vmem:[%s1629] sm:$0x3]
        %v1632 = vsel %vm269, %v1613, 0
        %v1635 = vsel %vm269, %v1614, 0
        %v1638 = vsel %vm269, %v1615, 0
        %v1641 = vsel %vm269, %v1616, 0
        %v1644 = vsel %vm269, %v1617, 0
        %v1647 = vsel %vm269, %v1618, 0
        %v1650 = vsel %vm269, %v1619, 0
        %v1653 = vsel %vm269, %v1620, 0
        %v1656 = vsel %vm269, %v1621, 0
        %v1659 = vsel %vm269, %v1622, 0
        %v1662 = vsel %vm269, %v1623, 0
        %v1665 = vsel %vm269, %v1624, 0
        %v1668 = vsel %vm269, %v1625, 0
        %v1671 = vsel %vm269, %v1626, 0
        %v1674 = vsel %vm269, %v1627, 0
        %v1677 = vsel %vm269, %v1628, 0
        %v1680 = vand.u32 %v1630, %v321
        %1682 = vmatprep.subr.bf16.mxu0 0
        %1683 = vmatpush1.bf16.msra.mxu0 %v1680
        %1684 = vmatprep.subr.bf16.mxu0 0
        %1685 = vmatpush1.bf16.msra.mxu0 0
        %1686 = vmatprep.subr.bf16.mxu0 0
        %1687 = vmatpush1.bf16.msra.mxu0 0
        %1688 = vmatprep.subr.bf16.mxu0 0
        %1689 = vmatpush1.bf16.msra.mxu0 0
        %1690 = vmatprep.subr.bf16.mxu0 0
        %1691 = vmatpush1.bf16.msra.mxu0 0
        %1692 = vmatprep.subr.bf16.mxu0 0
        %1693 = vmatpush1.bf16.msra.mxu0 0
        %1694 = vmatprep.subr.bf16.mxu0 0
        %1695 = vmatpush1.bf16.msra.mxu0 0
        %1696 = vmatprep.subr.bf16.mxu0 0
        %1697 = vmatpush1.bf16.msra.mxu0 0
        %1698 = vmatprep.subr.bf16.mxu0 0
        %1699 = vmatpush1.bf16.msra.mxu0 0
        %1700 = vmatprep.subr.bf16.mxu0 0
        %1701 = vmatpush1.bf16.msra.mxu0 0
        %1702 = vmatprep.subr.bf16.mxu0 0
        %1703 = vmatpush1.bf16.msra.mxu0 0
        %1704 = vmatprep.subr.bf16.mxu0 0
        %1705 = vmatpush1.bf16.msra.mxu0 0
        %1706 = vmatprep.subr.bf16.mxu0 0
        %1707 = vmatpush1.bf16.msra.mxu0 0
        %1708 = vmatprep.subr.bf16.mxu0 0
        %1709 = vmatpush1.bf16.msra.mxu0 0
        %1710 = vmatprep.subr.bf16.mxu0 0
        %1711 = vmatpush1.bf16.msra.mxu0 0
        %1712 = vmatprep.subr.bf16.mxu0 0
        %1713 = vmatpush1.bf16.msra.mxu0 0
        %1714 = vmatprep.mubr.bf16.mxu0 0
        %1715 = vmatmul.mubr.bf16.gmra.mrb[0].mxu0 %v1632
        %v1716 = vpop.f32.mrb[0].mxu0
        %v1717 = vadd.f32 0.0, %v1716
        %v1718 = vpop.f32.mrb[0].mxu0
        %v1719 = vpop.f32.mrb[0].mxu0
        %v1720 = vadd.f32 0.0, %v1719
        %v1721 = vpop.f32.mrb[0].mxu0
        %1722 = vmatprep.mubr.bf16.mxu0 0
        %1723 = vmatmul.mubr.bf16.gmra.mrb[0].mxu0 %v1635
        %v1724 = vpop.f32.mrb[0].mxu0
        %v1725 = vadd.f32 0.0, %v1724
        %v1726 = vpop.f32.mrb[0].mxu0
        %v1727 = vpop.f32.mrb[0].mxu0
        %v1728 = vadd.f32 0.0, %v1727
        %v1729 = vpop.f32.mrb[0].mxu0
        %1730 = vmatprep.mubr.bf16.mxu0 0
        %1731 = vmatmul.mubr.bf16.gmra.mrb[0].mxu0 %v1638
        %v1732 = vpop.f32.mrb[0].mxu0
        %v1733 = vadd.f32 0.0, %v1732
        %v1734 = vpop.f32.mrb[0].mxu0
        %v1735 = vpop.f32.mrb[0].mxu0
        %v1736 = vadd.f32 0.0, %v1735
        %v1737 = vpop.f32.mrb[0].mxu0
        %1738 = vmatprep.mubr.bf16.mxu0 0
        %1739 = vmatmul.mubr.bf16.gmra.mrb[0].mxu0 %v1641
        %v1740 = vpop.f32.mrb[0].mxu0
        %v1741 = vadd.f32 0.0, %v1740
        %v1742 = vpop.f32.mrb[0].mxu0
        %v1743 = vpop.f32.mrb[0].mxu0
        %v1744 = vadd.f32 0.0, %v1743
        %v1745 = vpop.f32.mrb[0].mxu0
        %1746 = vmatprep.mubr.bf16.mxu0 0
        %1747 = vmatmul.mubr.bf16.gmra.mrb[0].mxu0 %v1644
        %v1748 = vpop.f32.mrb[0].mxu0
        %v1749 = vadd.f32 0.0, %v1748
        %v1750 = vpop.f32.mrb[0].mxu0
        %v1751 = vpop.f32.mrb[0].mxu0
        %v1752 = vadd.f32 0.0, %v1751
        %v1753 = vpop.f32.mrb[0].mxu0
        %1754 = vmatprep.mubr.bf16.mxu0 0
        %1755 = vmatmul.mubr.bf16.gmra.mrb[0].mxu0 %v1647
        %v1756 = vpop.f32.mrb[0].mxu0
        %v1757 = vadd.f32 0.0, %v1756
        %v1758 = vpop.f32.mrb[0].mxu0
        %v1759 = vpop.f32.mrb[0].mxu0
        %v1760 = vadd.f32 0.0, %v1759
        %v1761 = vpop.f32.mrb[0].mxu0
        %1762 = vmatprep.mubr.bf16.mxu0 0
        %1763 = vmatmul.mubr.bf16.gmra.mrb[0].mxu0 %v1650
        %v1764 = vpop.f32.mrb[0].mxu0
        %v1765 = vadd.f32 0.0, %v1764
        %v1766 = vpop.f32.mrb[0].mxu0
        %v1767 = vpop.f32.mrb[0].mxu0
        %v1768 = vadd.f32 0.0, %v1767
        %v1769 = vpop.f32.mrb[0].mxu0
        %1770 = vmatprep.mubr.bf16.mxu0 0
        %1771 = vmatmul.mubr.bf16.gmra.mrb[0].mxu0 %v1653
        %v1772 = vpop.f32.mrb[0].mxu0
        %v1773 = vadd.f32 0.0, %v1772
        %v1774 = vpop.f32.mrb[0].mxu0
        %v1775 = vpop.f32.mrb[0].mxu0
        %v1776 = vadd.f32 0.0, %v1775
        %v1777 = vpop.f32.mrb[0].mxu0
        %1778 = vmatprep.mubr.bf16.mxu0 0
        %1779 = vmatmul.mubr.bf16.gmra.mrb[0].mxu0 %v1656
        %v1780 = vpop.f32.mrb[0].mxu0
        %v1781 = vadd.f32 0.0, %v1780
        %v1782 = vpop.f32.mrb[0].mxu0
        %v1783 = vpop.f32.mrb[0].mxu0
        %v1784 = vadd.f32 0.0, %v1783
        %v1785 = vpop.f32.mrb[0].mxu0
        %1786 = vmatprep.mubr.bf16.mxu0 0
        %1787 = vmatmul.mubr.bf16.gmra.mrb[0].mxu0 %v1659
        %v1788 = vpop.f32.mrb[0].mxu0
        %v1789 = vadd.f32 0.0, %v1788
        %v1790 = vpop.f32.mrb[0].mxu0
        %v1791 = vpop.f32.mrb[0].mxu0
        %v1792 = vadd.f32 0.0, %v1791
        %v1793 = vpop.f32.mrb[0].mxu0
        %1794 = vmatprep.mubr.bf16.mxu0 0
        %1795 = vmatmul.mubr.bf16.gmra.mrb[0].mxu0 %v1662
        %v1796 = vpop.f32.mrb[0].mxu0
        %v1797 = vadd.f32 0.0, %v1796
        %v1798 = vpop.f32.mrb[0].mxu0
        %v1799 = vpop.f32.mrb[0].mxu0
        %v1800 = vadd.f32 0.0, %v1799
        %v1801 = vpop.f32.mrb[0].mxu0
        %1802 = vmatprep.mubr.bf16.mxu0 0
        %1803 = vmatmul.mubr.bf16.gmra.mrb[0].mxu0 %v1665
        %v1804 = vpop.f32.mrb[0].mxu0
        %v1805 = vadd.f32 0.0, %v1804
        %v1806 = vpop.f32.mrb[0].mxu0
        %v1807 = vpop.f32.mrb[0].mxu0
        %v1808 = vadd.f32 0.0, %v1807
        %v1809 = vpop.f32.mrb[0].mxu0
        %1810 = vmatprep.mubr.bf16.mxu0 0
        %1811 = vmatmul.mubr.bf16.gmra.mrb[0].mxu0 %v1668
        %v1812 = vpop.f32.mrb[0].mxu0
        %v1813 = vadd.f32 0.0, %v1812
        %v1814 = vpop.f32.mrb[0].mxu0
        %v1815 = vpop.f32.mrb[0].mxu0
        %v1816 = vadd.f32 0.0, %v1815
        %v1817 = vpop.f32.mrb[0].mxu0
        %1818 = vmatprep.mubr.bf16.mxu0 0
        %1819 = vmatmul.mubr.bf16.gmra.mrb[0].mxu0 %v1671
        %v1820 = vpop.f32.mrb[0].mxu0
        %v1821 = vadd.f32 0.0, %v1820
        %v1822 = vpop.f32.mrb[0].mxu0
        %v1823 = vpop.f32.mrb[0].mxu0
        %v1824 = vadd.f32 0.0, %v1823
        %v1825 = vpop.f32.mrb[0].mxu0
        %1826 = vmatprep.mubr.bf16.mxu0 0
        %1827 = vmatmul.mubr.bf16.gmra.mrb[0].mxu0 %v1674
        %v1828 = vpop.f32.mrb[0].mxu0
        %v1829 = vadd.f32 0.0, %v1828
        %v1830 = vpop.f32.mrb[0].mxu0
        %v1831 = vpop.f32.mrb[0].mxu0
        %v1832 = vadd.f32 0.0, %v1831
        %v1833 = vpop.f32.mrb[0].mxu0
        %1834 = vmatprep.mubr.bf16.mxu0 0
        %1835 = vmatmul.mubr.bf16.gmra.mrb[0].mxu0 %v1677
        %v1836 = vpop.f32.mrb[0].mxu0
        %v1837 = vadd.f32 0.0, %v1836
        %v1838 = vpop.f32.mrb[0].mxu0
        %v1839 = vpop.f32.mrb[0].mxu0
        %v1840 = vadd.f32 0.0, %v1839
        %v1841 = vpop.f32.mrb[0].mxu0
        %1842 = vdwg.mxu0
        %v1843 = vadd.f32 %v1549, %v1717
        %v1844 = vadd.f32 %v1550, %v1720
        %v1845 = vadd.f32 %v1551, %v1725
        %v1846 = vadd.f32 %v1552, %v1728
        %v1847 = vadd.f32 %v1553, %v1733
        %v1848 = vadd.f32 %v1554, %v1736
        %v1849 = vadd.f32 %v1555, %v1741
        %v1850 = vadd.f32 %v1556, %v1744
        %v1851 = vadd.f32 %v1557, %v1749
        %v1852 = vadd.f32 %v1558, %v1752
        %v1853 = vadd.f32 %v1559, %v1757
        %v1854 = vadd.f32 %v1560, %v1760
        %v1855 = vadd.f32 %v1561, %v1765
        %v1856 = vadd.f32 %v1562, %v1768
        %v1857 = vadd.f32 %v1563, %v1773
        %v1858 = vadd.f32 %v1564, %v1776
        %v1859 = vadd.f32 %v1565, %v1781
        %v1860 = vadd.f32 %v1566, %v1784
        %v1861 = vadd.f32 %v1567, %v1789
        %v1862 = vadd.f32 %v1568, %v1792
        %v1863 = vadd.f32 %v1569, %v1797
        %v1864 = vadd.f32 %v1570, %v1800
        %v1865 = vadd.f32 %v1571, %v1805
        %v1866 = vadd.f32 %v1572, %v1808
        %v1867 = vadd.f32 %v1573, %v1813
        %v1868 = vadd.f32 %v1574, %v1816
        %v1869 = vadd.f32 %v1575, %v1821
        %v1870 = vadd.f32 %v1576, %v1824
        %v1871 = vadd.f32 %v1577, %v1829
        %v1872 = vadd.f32 %v1578, %v1832
        %v1873 = vadd.f32 %v1579, %v1837
        %v1874 = vadd.f32 %v1580, %v1840
        %s1875 = scalar_lea.vmem %s168, 48
        %v1876 = vld [vmem:[%s1875] sm:$0xff]
        %v1877 = vld [vmem:[%s1875 + $0x8] sm:$0xff]
        %v1878 = vld [vmem:[%s1875 + $0x18] sm:$0xff]
        %v1879 = vld [vmem:[%s1875 + $0x20] sm:$0xff]
        %v1880 = vld [vmem:[%s1875 + $0x30] sm:$0xff]
        %v1881 = vld [vmem:[%s1875 + $0x38] sm:$0xff]
        %v1882 = vld [vmem:[%s1875 + $0x48] sm:$0xff]
        %v1883 = vld [vmem:[%s1875 + $0x50] sm:$0xff]
        %v1884 = vld [vmem:[%s1875 + $0x60] sm:$0xff]
        %v1885 = vld [vmem:[%s1875 + $0x68] sm:$0xff]
        %v1886 = vld [vmem:[%s1875 + $0x78] sm:$0xff]
        %v1887 = vld [vmem:[%s1875 + $0x80] sm:$0xff]
        %v1888 = vld [vmem:[%s1875 + $0x90] sm:$0xff]
        %v1889 = vld [vmem:[%s1875 + $0x98] sm:$0xff]
        %v1890 = vld [vmem:[%s1875 + $0xa8] sm:$0xff]
        %v1891 = vld [vmem:[%s1875 + $0xb0] sm:$0xff]
        %v1892 = vld [vmem:[%s1875 + $0xc0] sm:$0xff]
        %v1893 = vld [vmem:[%s1875 + $0xc8] sm:$0xff]
        %v1894 = vld [vmem:[%s1875 + $0xd8] sm:$0xff]
        %v1895 = vld [vmem:[%s1875 + $0xe0] sm:$0xff]
        %v1896 = vld [vmem:[%s1875 + $0xf0] sm:$0xff]
        %v1897 = vld [vmem:[%s1875 + $0xf8] sm:$0xff]
        %v1898 = vld [vmem:[%s1875 + $0x108] sm:$0xff]
        %v1899 = vld [vmem:[%s1875 + $0x110] sm:$0xff]
        %v1900 = vld [vmem:[%s1875 + $0x120] sm:$0xff]
        %v1901 = vld [vmem:[%s1875 + $0x128] sm:$0xff]
        %v1902 = vld [vmem:[%s1875 + $0x138] sm:$0xff]
        %v1903 = vld [vmem:[%s1875 + $0x140] sm:$0xff]
        %v1904 = vld [vmem:[%s1875 + $0x150] sm:$0xff]
        %v1905 = vld [vmem:[%s1875 + $0x158] sm:$0xff]
        %v1906 = vld [vmem:[%s1875 + $0x168] sm:$0xff]
        %v1907 = vld [vmem:[%s1875 + $0x170] sm:$0xff]
        %v1908 = vpack.c.bf16 %v1877, %v1876
        %v1909 = vpack.c.bf16 %v1879, %v1878
        %v1910 = vpack.c.bf16 %v1881, %v1880
        %v1911 = vpack.c.bf16 %v1883, %v1882
        %v1912 = vpack.c.bf16 %v1885, %v1884
        %v1913 = vpack.c.bf16 %v1887, %v1886
        %v1914 = vpack.c.bf16 %v1889, %v1888
        %v1915 = vpack.c.bf16 %v1891, %v1890
        %v1916 = vpack.c.bf16 %v1893, %v1892
        %v1917 = vpack.c.bf16 %v1895, %v1894
        %v1918 = vpack.c.bf16 %v1897, %v1896
        %v1919 = vpack.c.bf16 %v1899, %v1898
        %v1920 = vpack.c.bf16 %v1901, %v1900
        %v1921 = vpack.c.bf16 %v1903, %v1902
        %v1922 = vpack.c.bf16 %v1905, %v1904
        %v1923 = vpack.c.bf16 %v1907, %v1906
        %s1924 = scalar_lea.vmem %s1, 12
        %v1925 = vld [vmem:[%s1924] sm:$0x3]
        %v1927 = vsel %vm269, %v1908, 0
        %v1930 = vsel %vm269, %v1909, 0
        %v1933 = vsel %vm269, %v1910, 0
        %v1936 = vsel %vm269, %v1911, 0
        %v1939 = vsel %vm269, %v1912, 0
        %v1942 = vsel %vm269, %v1913, 0
        %v1945 = vsel %vm269, %v1914, 0
        %v1948 = vsel %vm269, %v1915, 0
        %v1951 = vsel %vm269, %v1916, 0
        %v1954 = vsel %vm269, %v1917, 0
        %v1957 = vsel %vm269, %v1918, 0
        %v1960 = vsel %vm269, %v1919, 0
        %v1963 = vsel %vm269, %v1920, 0
        %v1966 = vsel %vm269, %v1921, 0
        %v1969 = vsel %vm269, %v1922, 0
        %v1972 = vsel %vm269, %v1923, 0
        %v1975 = vand.u32 %v1925, %v321
        %1977 = vmatprep.subr.bf16.mxu0 0
        %1978 = vmatpush1.bf16.msra.mxu0 %v1975
        %1979 = vmatprep.subr.bf16.mxu0 0
        %1980 = vmatpush1.bf16.msra.mxu0 0
        %1981 = vmatprep.subr.bf16.mxu0 0
        %1982 = vmatpush1.bf16.msra.mxu0 0
        %1983 = vmatprep.subr.bf16.mxu0 0
        %1984 = vmatpush1.bf16.msra.mxu0 0
        %1985 = vmatprep.subr.bf16.mxu0 0
        %1986 = vmatpush1.bf16.msra.mxu0 0
        %1987 = vmatprep.subr.bf16.mxu0 0
        %1988 = vmatpush1.bf16.msra.mxu0 0
        %1989 = vmatprep.subr.bf16.mxu0 0
        %1990 = vmatpush1.bf16.msra.mxu0 0
        %1991 = vmatprep.subr.bf16.mxu0 0
        %1992 = vmatpush1.bf16.msra.mxu0 0
        %1993 = vmatprep.subr.bf16.mxu0 0
        %1994 = vmatpush1.bf16.msra.mxu0 0
        %1995 = vmatprep.subr.bf16.mxu0 0
        %1996 = vmatpush1.bf16.msra.mxu0 0
        %1997 = vmatprep.subr.bf16.mxu0 0
        %1998 = vmatpush1.bf16.msra.mxu0 0
        %1999 = vmatprep.subr.bf16.mxu0 0
        %2000 = vmatpush1.bf16.msra.mxu0 0
        %2001 = vmatprep.subr.bf16.mxu0 0
        %2002 = vmatpush1.bf16.msra.mxu0 0
        %2003 = vmatprep.subr.bf16.mxu0 0
        %2004 = vmatpush1.bf16.msra.mxu0 0
        %2005 = vmatprep.subr.bf16.mxu0 0
        %2006 = vmatpush1.bf16.msra.mxu0 0
        %2007 = vmatprep.subr.bf16.mxu0 0
        %2008 = vmatpush1.bf16.msra.mxu0 0
        %2009 = vmatprep.mubr.bf16.mxu0 0
        %2010 = vmatmul.mubr.bf16.gmra.mrb[0].mxu0 %v1927
        %v2011 = vpop.f32.mrb[0].mxu0
        %v2012 = vadd.f32 0.0, %v2011
        %v2013 = vpop.f32.mrb[0].mxu0
        %v2014 = vpop.f32.mrb[0].mxu0
        %v2015 = vadd.f32 0.0, %v2014
        %v2016 = vpop.f32.mrb[0].mxu0
        %2017 = vmatprep.mubr.bf16.mxu0 0
        %2018 = vmatmul.mubr.bf16.gmra.mrb[0].mxu0 %v1930
        %v2019 = vpop.f32.mrb[0].mxu0
        %v2020 = vadd.f32 0.0, %v2019
        %v2021 = vpop.f32.mrb[0].mxu0
        %v2022 = vpop.f32.mrb[0].mxu0
        %v2023 = vadd.f32 0.0, %v2022
        %v2024 = vpop.f32.mrb[0].mxu0
        %2025 = vmatprep.mubr.bf16.mxu0 0
        %2026 = vmatmul.mubr.bf16.gmra.mrb[0].mxu0 %v1933
        %v2027 = vpop.f32.mrb[0].mxu0
        %v2028 = vadd.f32 0.0, %v2027
        %v2029 = vpop.f32.mrb[0].mxu0
        %v2030 = vpop.f32.mrb[0].mxu0
        %v2031 = vadd.f32 0.0, %v2030
        %v2032 = vpop.f32.mrb[0].mxu0
        %2033 = vmatprep.mubr.bf16.mxu0 0
        %2034 = vmatmul.mubr.bf16.gmra.mrb[0].mxu0 %v1936
        %v2035 = vpop.f32.mrb[0].mxu0
        %v2036 = vadd.f32 0.0, %v2035
        %v2037 = vpop.f32.mrb[0].mxu0
        %v2038 = vpop.f32.mrb[0].mxu0
        %v2039 = vadd.f32 0.0, %v2038
        %v2040 = vpop.f32.mrb[0].mxu0
        %2041 = vmatprep.mubr.bf16.mxu0 0
        %2042 = vmatmul.mubr.bf16.gmra.mrb[0].mxu0 %v1939
        %v2043 = vpop.f32.mrb[0].mxu0
        %v2044 = vadd.f32 0.0, %v2043
        %v2045 = vpop.f32.mrb[0].mxu0
        %v2046 = vpop.f32.mrb[0].mxu0
        %v2047 = vadd.f32 0.0, %v2046
        %v2048 = vpop.f32.mrb[0].mxu0
        %2049 = vmatprep.mubr.bf16.mxu0 0
        %2050 = vmatmul.mubr.bf16.gmra.mrb[0].mxu0 %v1942
        %v2051 = vpop.f32.mrb[0].mxu0
        %v2052 = vadd.f32 0.0, %v2051
        %v2053 = vpop.f32.mrb[0].mxu0
        %v2054 = vpop.f32.mrb[0].mxu0
        %v2055 = vadd.f32 0.0, %v2054
        %v2056 = vpop.f32.mrb[0].mxu0
        %2057 = vmatprep.mubr.bf16.mxu0 0
        %2058 = vmatmul.mubr.bf16.gmra.mrb[0].mxu0 %v1945
        %v2059 = vpop.f32.mrb[0].mxu0
        %v2060 = vadd.f32 0.0, %v2059
        %v2061 = vpop.f32.mrb[0].mxu0
        %v2062 = vpop.f32.mrb[0].mxu0
        %v2063 = vadd.f32 0.0, %v2062
        %v2064 = vpop.f32.mrb[0].mxu0
        %2065 = vmatprep.mubr.bf16.mxu0 0
        %2066 = vmatmul.mubr.bf16.gmra.mrb[0].mxu0 %v1948
        %v2067 = vpop.f32.mrb[0].mxu0
        %v2068 = vadd.f32 0.0, %v2067
        %v2069 = vpop.f32.mrb[0].mxu0
        %v2070 = vpop.f32.mrb[0].mxu0
        %v2071 = vadd.f32 0.0, %v2070
        %v2072 = vpop.f32.mrb[0].mxu0
        %2073 = vmatprep.mubr.bf16.mxu0 0
        %2074 = vmatmul.mubr.bf16.gmra.mrb[0].mxu0 %v1951
        %v2075 = vpop.f32.mrb[0].mxu0
        %v2076 = vadd.f32 0.0, %v2075
        %v2077 = vpop.f32.mrb[0].mxu0
        %v2078 = vpop.f32.mrb[0].mxu0
        %v2079 = vadd.f32 0.0, %v2078
        %v2080 = vpop.f32.mrb[0].mxu0
        %2081 = vmatprep.mubr.bf16.mxu0 0
        %2082 = vmatmul.mubr.bf16.gmra.mrb[0].mxu0 %v1954
        %v2083 = vpop.f32.mrb[0].mxu0
        %v2084 = vadd.f32 0.0, %v2083
        %v2085 = vpop.f32.mrb[0].mxu0
        %v2086 = vpop.f32.mrb[0].mxu0
        %v2087 = vadd.f32 0.0, %v2086
        %v2088 = vpop.f32.mrb[0].mxu0
        %2089 = vmatprep.mubr.bf16.mxu0 0
        %2090 = vmatmul.mubr.bf16.gmra.mrb[0].mxu0 %v1957
        %v2091 = vpop.f32.mrb[0].mxu0
        %v2092 = vadd.f32 0.0, %v2091
        %v2093 = vpop.f32.mrb[0].mxu0
        %v2094 = vpop.f32.mrb[0].mxu0
        %v2095 = vadd.f32 0.0, %v2094
        %v2096 = vpop.f32.mrb[0].mxu0
        %2097 = vmatprep.mubr.bf16.mxu0 0
        %2098 = vmatmul.mubr.bf16.gmra.mrb[0].mxu0 %v1960
        %v2099 = vpop.f32.mrb[0].mxu0
        %v2100 = vadd.f32 0.0, %v2099
        %v2101 = vpop.f32.mrb[0].mxu0
        %v2102 = vpop.f32.mrb[0].mxu0
        %v2103 = vadd.f32 0.0, %v2102
        %v2104 = vpop.f32.mrb[0].mxu0
        %2105 = vmatprep.mubr.bf16.mxu0 0
        %2106 = vmatmul.mubr.bf16.gmra.mrb[0].mxu0 %v1963
        %v2107 = vpop.f32.mrb[0].mxu0
        %v2108 = vadd.f32 0.0, %v2107
        %v2109 = vpop.f32.mrb[0].mxu0
        %v2110 = vpop.f32.mrb[0].mxu0
        %v2111 = vadd.f32 0.0, %v2110
        %v2112 = vpop.f32.mrb[0].mxu0
        %2113 = vmatprep.mubr.bf16.mxu0 0
        %2114 = vmatmul.mubr.bf16.gmra.mrb[0].mxu0 %v1966
        %v2115 = vpop.f32.mrb[0].mxu0
        %v2116 = vadd.f32 0.0, %v2115
        %v2117 = vpop.f32.mrb[0].mxu0
        %v2118 = vpop.f32.mrb[0].mxu0
        %v2119 = vadd.f32 0.0, %v2118
        %v2120 = vpop.f32.mrb[0].mxu0
        %2121 = vmatprep.mubr.bf16.mxu0 0
        %2122 = vmatmul.mubr.bf16.gmra.mrb[0].mxu0 %v1969
        %v2123 = vpop.f32.mrb[0].mxu0
        %v2124 = vadd.f32 0.0, %v2123
        %v2125 = vpop.f32.mrb[0].mxu0
        %v2126 = vpop.f32.mrb[0].mxu0
        %v2127 = vadd.f32 0.0, %v2126
        %v2128 = vpop.f32.mrb[0].mxu0
        %2129 = vmatprep.mubr.bf16.mxu0 0
        %2130 = vmatmul.mubr.bf16.gmra.mrb[0].mxu0 %v1972
        %v2131 = vpop.f32.mrb[0].mxu0
        %v2132 = vadd.f32 0.0, %v2131
        %v2133 = vpop.f32.mrb[0].mxu0
        %v2134 = vpop.f32.mrb[0].mxu0
        %v2135 = vadd.f32 0.0, %v2134
        %v2136 = vpop.f32.mrb[0].mxu0
        %2137 = vdwg.mxu0
        %v2138 = vadd.f32 %v1843, %v2012
        %v2139 = vadd.f32 %v1844, %v2015
        %v2140 = vadd.f32 %v1845, %v2020
        %v2141 = vadd.f32 %v1846, %v2023
        %v2142 = vadd.f32 %v1847, %v2028
        %v2143 = vadd.f32 %v1848, %v2031
        %v2144 = vadd.f32 %v1849, %v2036
        %v2145 = vadd.f32 %v1850, %v2039
        %v2146 = vadd.f32 %v1851, %v2044
        %v2147 = vadd.f32 %v1852, %v2047
        %v2148 = vadd.f32 %v1853, %v2052
        %v2149 = vadd.f32 %v1854, %v2055
        %v2150 = vadd.f32 %v1855, %v2060
        %v2151 = vadd.f32 %v1856, %v2063
        %v2152 = vadd.f32 %v1857, %v2068
        %v2153 = vadd.f32 %v1858, %v2071
        %v2154 = vadd.f32 %v1859, %v2076
        %v2155 = vadd.f32 %v1860, %v2079
        %v2156 = vadd.f32 %v1861, %v2084
        %v2157 = vadd.f32 %v1862, %v2087
        %v2158 = vadd.f32 %v1863, %v2092
        %v2159 = vadd.f32 %v1864, %v2095
        %v2160 = vadd.f32 %v1865, %v2100
        %v2161 = vadd.f32 %v1866, %v2103
        %v2162 = vadd.f32 %v1867, %v2108
        %v2163 = vadd.f32 %v1868, %v2111
        %v2164 = vadd.f32 %v1869, %v2116
        %v2165 = vadd.f32 %v1870, %v2119
        %v2166 = vadd.f32 %v1871, %v2124
        %v2167 = vadd.f32 %v1872, %v2127
        %v2168 = vadd.f32 %v1873, %v2132
        %v2169 = vadd.f32 %v1874, %v2135
        %v2170 = vld [vmem:[%s1875 + $0x1] sm:$0xff]
        %v2171 = vld [vmem:[%s1875 + $0x9] sm:$0xff]
        %v2172 = vld [vmem:[%s1875 + $0x19] sm:$0xff]
        %v2173 = vld [vmem:[%s1875 + $0x21] sm:$0xff]
        %v2174 = vld [vmem:[%s1875 + $0x31] sm:$0xff]
        %v2175 = vld [vmem:[%s1875 + $0x39] sm:$0xff]
        %v2176 = vld [vmem:[%s1875 + $0x49] sm:$0xff]
        %v2177 = vld [vmem:[%s1875 + $0x51] sm:$0xff]
        %v2178 = vld [vmem:[%s1875 + $0x61] sm:$0xff]
        %v2179 = vld [vmem:[%s1875 + $0x69] sm:$0xff]
        %v2180 = vld [vmem:[%s1875 + $0x79] sm:$0xff]
        %v2181 = vld [vmem:[%s1875 + $0x81] sm:$0xff]
        %v2182 = vld [vmem:[%s1875 + $0x91] sm:$0xff]
        %v2183 = vld [vmem:[%s1875 + $0x99] sm:$0xff]
        %v2184 = vld [vmem:[%s1875 + $0xa9] sm:$0xff]
        %v2185 = vld [vmem:[%s1875 + $0xb1] sm:$0xff]
        %v2186 = vld [vmem:[%s1875 + $0xc1] sm:$0xff]
        %v2187 = vld [vmem:[%s1875 + $0xc9] sm:$0xff]
        %v2188 = vld [vmem:[%s1875 + $0xd9] sm:$0xff]
        %v2189 = vld [vmem:[%s1875 + $0xe1] sm:$0xff]
        %v2190 = vld [vmem:[%s1875 + $0xf1] sm:$0xff]
        %v2191 = vld [vmem:[%s1875 + $0xf9] sm:$0xff]
        %v2192 = vld [vmem:[%s1875 + $0x109] sm:$0xff]
        %v2193 = vld [vmem:[%s1875 + $0x111] sm:$0xff]
        %v2194 = vld [vmem:[%s1875 + $0x121] sm:$0xff]
        %v2195 = vld [vmem:[%s1875 + $0x129] sm:$0xff]
        %v2196 = vld [vmem:[%s1875 + $0x139] sm:$0xff]
        %v2197 = vld [vmem:[%s1875 + $0x141] sm:$0xff]
        %v2198 = vld [vmem:[%s1875 + $0x151] sm:$0xff]
        %v2199 = vld [vmem:[%s1875 + $0x159] sm:$0xff]
        %v2200 = vld [vmem:[%s1875 + $0x169] sm:$0xff]
        %v2201 = vld [vmem:[%s1875 + $0x171] sm:$0xff]
        %v2202 = vpack.c.bf16 %v2171, %v2170
        %v2203 = vpack.c.bf16 %v2173, %v2172
        %v2204 = vpack.c.bf16 %v2175, %v2174
        %v2205 = vpack.c.bf16 %v2177, %v2176
        %v2206 = vpack.c.bf16 %v2179, %v2178
        %v2207 = vpack.c.bf16 %v2181, %v2180
        %v2208 = vpack.c.bf16 %v2183, %v2182
        %v2209 = vpack.c.bf16 %v2185, %v2184
        %v2210 = vpack.c.bf16 %v2187, %v2186
        %v2211 = vpack.c.bf16 %v2189, %v2188
        %v2212 = vpack.c.bf16 %v2191, %v2190
        %v2213 = vpack.c.bf16 %v2193, %v2192
        %v2214 = vpack.c.bf16 %v2195, %v2194
        %v2215 = vpack.c.bf16 %v2197, %v2196
        %v2216 = vpack.c.bf16 %v2199, %v2198
        %v2217 = vpack.c.bf16 %v2201, %v2200
        %s2218 = scalar_lea.vmem %s1, 14
        %v2219 = vld [vmem:[%s2218] sm:$0x3]
        %v2221 = vsel %vm269, %v2202, 0
        %v2224 = vsel %vm269, %v2203, 0
        %v2227 = vsel %vm269, %v2204, 0
        %v2230 = vsel %vm269, %v2205, 0
        %v2233 = vsel %vm269, %v2206, 0
        %v2236 = vsel %vm269, %v2207, 0
        %v2239 = vsel %vm269, %v2208, 0
        %v2242 = vsel %vm269, %v2209, 0
        %v2245 = vsel %vm269, %v2210, 0
        %v2248 = vsel %vm269, %v2211, 0
        %v2251 = vsel %vm269, %v2212, 0
        %v2254 = vsel %vm269, %v2213, 0
        %v2257 = vsel %vm269, %v2214, 0
        %v2260 = vsel %vm269, %v2215, 0
        %v2263 = vsel %vm269, %v2216, 0
        %v2266 = vsel %vm269, %v2217, 0
        %v2269 = vand.u32 %v2219, %v321
        %2271 = vmatprep.subr.bf16.mxu0 0
        %2272 = vmatpush1.bf16.msra.mxu0 %v2269
        %2273 = vmatprep.subr.bf16.mxu0 0
        %2274 = vmatpush1.bf16.msra.mxu0 0
        %2275 = vmatprep.subr.bf16.mxu0 0
        %2276 = vmatpush1.bf16.msra.mxu0 0
        %2277 = vmatprep.subr.bf16.mxu0 0
        %2278 = vmatpush1.bf16.msra.mxu0 0
        %2279 = vmatprep.subr.bf16.mxu0 0
        %2280 = vmatpush1.bf16.msra.mxu0 0
        %2281 = vmatprep.subr.bf16.mxu0 0
        %2282 = vmatpush1.bf16.msra.mxu0 0
        %2283 = vmatprep.subr.bf16.mxu0 0
        %2284 = vmatpush1.bf16.msra.mxu0 0
        %2285 = vmatprep.subr.bf16.mxu0 0
        %2286 = vmatpush1.bf16.msra.mxu0 0
        %2287 = vmatprep.subr.bf16.mxu0 0
        %2288 = vmatpush1.bf16.msra.mxu0 0
        %2289 = vmatprep.subr.bf16.mxu0 0
        %2290 = vmatpush1.bf16.msra.mxu0 0
        %2291 = vmatprep.subr.bf16.mxu0 0
        %2292 = vmatpush1.bf16.msra.mxu0 0
        %2293 = vmatprep.subr.bf16.mxu0 0
        %2294 = vmatpush1.bf16.msra.mxu0 0
        %2295 = vmatprep.subr.bf16.mxu0 0
        %2296 = vmatpush1.bf16.msra.mxu0 0
        %2297 = vmatprep.subr.bf16.mxu0 0
        %2298 = vmatpush1.bf16.msra.mxu0 0
        %2299 = vmatprep.subr.bf16.mxu0 0
        %2300 = vmatpush1.bf16.msra.mxu0 0
        %2301 = vmatprep.subr.bf16.mxu0 0
        %2302 = vmatpush1.bf16.msra.mxu0 0
        %2303 = vmatprep.mubr.bf16.mxu0 0
        %2304 = vmatmul.mubr.bf16.gmra.mrb[0].mxu0 %v2221
        %v2305 = vpop.f32.mrb[0].mxu0
        %v2306 = vadd.f32 0.0, %v2305
        %v2307 = vpop.f32.mrb[0].mxu0
        %v2308 = vpop.f32.mrb[0].mxu0
        %v2309 = vadd.f32 0.0, %v2308
        %v2310 = vpop.f32.mrb[0].mxu0
        %2311 = vmatprep.mubr.bf16.mxu0 0
        %2312 = vmatmul.mubr.bf16.gmra.mrb[0].mxu0 %v2224
        %v2313 = vpop.f32.mrb[0].mxu0
        %v2314 = vadd.f32 0.0, %v2313
        %v2315 = vpop.f32.mrb[0].mxu0
        %v2316 = vpop.f32.mrb[0].mxu0
        %v2317 = vadd.f32 0.0, %v2316
        %v2318 = vpop.f32.mrb[0].mxu0
        %2319 = vmatprep.mubr.bf16.mxu0 0
        %2320 = vmatmul.mubr.bf16.gmra.mrb[0].mxu0 %v2227
        %v2321 = vpop.f32.mrb[0].mxu0
        %v2322 = vadd.f32 0.0, %v2321
        %v2323 = vpop.f32.mrb[0].mxu0
        %v2324 = vpop.f32.mrb[0].mxu0
        %v2325 = vadd.f32 0.0, %v2324
        %v2326 = vpop.f32.mrb[0].mxu0
        %2327 = vmatprep.mubr.bf16.mxu0 0
        %2328 = vmatmul.mubr.bf16.gmra.mrb[0].mxu0 %v2230
        %v2329 = vpop.f32.mrb[0].mxu0
        %v2330 = vadd.f32 0.0, %v2329
        %v2331 = vpop.f32.mrb[0].mxu0
        %v2332 = vpop.f32.mrb[0].mxu0
        %v2333 = vadd.f32 0.0, %v2332
        %v2334 = vpop.f32.mrb[0].mxu0
        %2335 = vmatprep.mubr.bf16.mxu0 0
        %2336 = vmatmul.mubr.bf16.gmra.mrb[0].mxu0 %v2233
        %v2337 = vpop.f32.mrb[0].mxu0
        %v2338 = vadd.f32 0.0, %v2337
        %v2339 = vpop.f32.mrb[0].mxu0
        %v2340 = vpop.f32.mrb[0].mxu0
        %v2341 = vadd.f32 0.0, %v2340
        %v2342 = vpop.f32.mrb[0].mxu0
        %2343 = vmatprep.mubr.bf16.mxu0 0
        %2344 = vmatmul.mubr.bf16.gmra.mrb[0].mxu0 %v2236
        %v2345 = vpop.f32.mrb[0].mxu0
        %v2346 = vadd.f32 0.0, %v2345
        %v2347 = vpop.f32.mrb[0].mxu0
        %v2348 = vpop.f32.mrb[0].mxu0
        %v2349 = vadd.f32 0.0, %v2348
        %v2350 = vpop.f32.mrb[0].mxu0
        %2351 = vmatprep.mubr.bf16.mxu0 0
        %2352 = vmatmul.mubr.bf16.gmra.mrb[0].mxu0 %v2239
        %v2353 = vpop.f32.mrb[0].mxu0
        %v2354 = vadd.f32 0.0, %v2353
        %v2355 = vpop.f32.mrb[0].mxu0
        %v2356 = vpop.f32.mrb[0].mxu0
        %v2357 = vadd.f32 0.0, %v2356
        %v2358 = vpop.f32.mrb[0].mxu0
        %2359 = vmatprep.mubr.bf16.mxu0 0
        %2360 = vmatmul.mubr.bf16.gmra.mrb[0].mxu0 %v2242
        %v2361 = vpop.f32.mrb[0].mxu0
        %v2362 = vadd.f32 0.0, %v2361
        %v2363 = vpop.f32.mrb[0].mxu0
        %v2364 = vpop.f32.mrb[0].mxu0
        %v2365 = vadd.f32 0.0, %v2364
        %v2366 = vpop.f32.mrb[0].mxu0
        %2367 = vmatprep.mubr.bf16.mxu0 0
        %2368 = vmatmul.mubr.bf16.gmra.mrb[0].mxu0 %v2245
        %v2369 = vpop.f32.mrb[0].mxu0
        %v2370 = vadd.f32 0.0, %v2369
        %v2371 = vpop.f32.mrb[0].mxu0
        %v2372 = vpop.f32.mrb[0].mxu0
        %v2373 = vadd.f32 0.0, %v2372
        %v2374 = vpop.f32.mrb[0].mxu0
        %2375 = vmatprep.mubr.bf16.mxu0 0
        %2376 = vmatmul.mubr.bf16.gmra.mrb[0].mxu0 %v2248
        %v2377 = vpop.f32.mrb[0].mxu0
        %v2378 = vadd.f32 0.0, %v2377
        %v2379 = vpop.f32.mrb[0].mxu0
        %v2380 = vpop.f32.mrb[0].mxu0
        %v2381 = vadd.f32 0.0, %v2380
        %v2382 = vpop.f32.mrb[0].mxu0
        %2383 = vmatprep.mubr.bf16.mxu0 0
        %2384 = vmatmul.mubr.bf16.gmra.mrb[0].mxu0 %v2251
        %v2385 = vpop.f32.mrb[0].mxu0
        %v2386 = vadd.f32 0.0, %v2385
        %v2387 = vpop.f32.mrb[0].mxu0
        %v2388 = vpop.f32.mrb[0].mxu0
        %v2389 = vadd.f32 0.0, %v2388
        %v2390 = vpop.f32.mrb[0].mxu0
        %2391 = vmatprep.mubr.bf16.mxu0 0
        %2392 = vmatmul.mubr.bf16.gmra.mrb[0].mxu0 %v2254
        %v2393 = vpop.f32.mrb[0].mxu0
        %v2394 = vadd.f32 0.0, %v2393
        %v2395 = vpop.f32.mrb[0].mxu0
        %v2396 = vpop.f32.mrb[0].mxu0
        %v2397 = vadd.f32 0.0, %v2396
        %v2398 = vpop.f32.mrb[0].mxu0
        %2399 = vmatprep.mubr.bf16.mxu0 0
        %2400 = vmatmul.mubr.bf16.gmra.mrb[0].mxu0 %v2257
        %v2401 = vpop.f32.mrb[0].mxu0
        %v2402 = vadd.f32 0.0, %v2401
        %v2403 = vpop.f32.mrb[0].mxu0
        %v2404 = vpop.f32.mrb[0].mxu0
        %v2405 = vadd.f32 0.0, %v2404
        %v2406 = vpop.f32.mrb[0].mxu0
        %2407 = vmatprep.mubr.bf16.mxu0 0
        %2408 = vmatmul.mubr.bf16.gmra.mrb[0].mxu0 %v2260
        %v2409 = vpop.f32.mrb[0].mxu0
        %v2410 = vadd.f32 0.0, %v2409
        %v2411 = vpop.f32.mrb[0].mxu0
        %v2412 = vpop.f32.mrb[0].mxu0
        %v2413 = vadd.f32 0.0, %v2412
        %v2414 = vpop.f32.mrb[0].mxu0
        %2415 = vmatprep.mubr.bf16.mxu0 0
        %2416 = vmatmul.mubr.bf16.gmra.mrb[0].mxu0 %v2263
        %v2417 = vpop.f32.mrb[0].mxu0
        %v2418 = vadd.f32 0.0, %v2417
        %v2419 = vpop.f32.mrb[0].mxu0
        %v2420 = vpop.f32.mrb[0].mxu0
        %v2421 = vadd.f32 0.0, %v2420
        %v2422 = vpop.f32.mrb[0].mxu0
        %2423 = vmatprep.mubr.bf16.mxu0 0
        %2424 = vmatmul.mubr.bf16.gmra.mrb[0].mxu0 %v2266
        %v2425 = vpop.f32.mrb[0].mxu0
        %v2426 = vadd.f32 0.0, %v2425
        %v2427 = vpop.f32.mrb[0].mxu0
        %v2428 = vpop.f32.mrb[0].mxu0
        %v2429 = vadd.f32 0.0, %v2428
        %v2430 = vpop.f32.mrb[0].mxu0
        %2431 = vdwg.mxu0
        %v2432 = vadd.f32 %v2138, %v2306
        %v2433 = vadd.f32 %v2139, %v2309
        %v2434 = vadd.f32 %v2140, %v2314
        %v2435 = vadd.f32 %v2141, %v2317
        %v2436 = vadd.f32 %v2142, %v2322
        %v2437 = vadd.f32 %v2143, %v2325
        %v2438 = vadd.f32 %v2144, %v2330
        %v2439 = vadd.f32 %v2145, %v2333
        %v2440 = vadd.f32 %v2146, %v2338
        %v2441 = vadd.f32 %v2147, %v2341
        %v2442 = vadd.f32 %v2148, %v2346
        %v2443 = vadd.f32 %v2149, %v2349
        %v2444 = vadd.f32 %v2150, %v2354
        %v2445 = vadd.f32 %v2151, %v2357
        %v2446 = vadd.f32 %v2152, %v2362
        %v2447 = vadd.f32 %v2153, %v2365
        %v2448 = vadd.f32 %v2154, %v2370
        %v2449 = vadd.f32 %v2155, %v2373
        %v2450 = vadd.f32 %v2156, %v2378
        %v2451 = vadd.f32 %v2157, %v2381
        %v2452 = vadd.f32 %v2158, %v2386
        %v2453 = vadd.f32 %v2159, %v2389
        %v2454 = vadd.f32 %v2160, %v2394
        %v2455 = vadd.f32 %v2161, %v2397
        %v2456 = vadd.f32 %v2162, %v2402
        %v2457 = vadd.f32 %v2163, %v2405
        %v2458 = vadd.f32 %v2164, %v2410
        %v2459 = vadd.f32 %v2165, %v2413
        %v2460 = vadd.f32 %v2166, %v2418
        %v2461 = vadd.f32 %v2167, %v2421
        %v2462 = vadd.f32 %v2168, %v2426
        %v2463 = vadd.f32 %v2169, %v2429
        %v2464 = vld [vmem:[%s1875 + $0x2] sm:$0xff]
        %v2465 = vld [vmem:[%s1875 + $0xa] sm:$0xff]
        %v2466 = vld [vmem:[%s1875 + $0x1a] sm:$0xff]
        %v2467 = vld [vmem:[%s1875 + $0x22] sm:$0xff]
        %v2468 = vld [vmem:[%s1875 + $0x32] sm:$0xff]
        %v2469 = vld [vmem:[%s1875 + $0x3a] sm:$0xff]
        %v2470 = vld [vmem:[%s1875 + $0x4a] sm:$0xff]
        %v2471 = vld [vmem:[%s1875 + $0x52] sm:$0xff]
        %v2472 = vld [vmem:[%s1875 + $0x62] sm:$0xff]
        %v2473 = vld [vmem:[%s1875 + $0x6a] sm:$0xff]
        %v2474 = vld [vmem:[%s1875 + $0x7a] sm:$0xff]
        %v2475 = vld [vmem:[%s1875 + $0x82] sm:$0xff]
        %v2476 = vld [vmem:[%s1875 + $0x92] sm:$0xff]
        %v2477 = vld [vmem:[%s1875 + $0x9a] sm:$0xff]
        %v2478 = vld [vmem:[%s1875 + $0xaa] sm:$0xff]
        %v2479 = vld [vmem:[%s1875 + $0xb2] sm:$0xff]
        %v2480 = vld [vmem:[%s1875 + $0xc2] sm:$0xff]
        %v2481 = vld [vmem:[%s1875 + $0xca] sm:$0xff]
        %v2482 = vld [vmem:[%s1875 + $0xda] sm:$0xff]
        %v2483 = vld [vmem:[%s1875 + $0xe2] sm:$0xff]
        %v2484 = vld [vmem:[%s1875 + $0xf2] sm:$0xff]
        %v2485 = vld [vmem:[%s1875 + $0xfa] sm:$0xff]
        %v2486 = vld [vmem:[%s1875 + $0x10a] sm:$0xff]
        %v2487 = vld [vmem:[%s1875 + $0x112] sm:$0xff]
        %v2488 = vld [vmem:[%s1875 + $0x122] sm:$0xff]
        %v2489 = vld [vmem:[%s1875 + $0x12a] sm:$0xff]
        %v2490 = vld [vmem:[%s1875 + $0x13a] sm:$0xff]
        %v2491 = vld [vmem:[%s1875 + $0x142] sm:$0xff]
        %v2492 = vld [vmem:[%s1875 + $0x152] sm:$0xff]
        %v2493 = vld [vmem:[%s1875 + $0x15a] sm:$0xff]
        %v2494 = vld [vmem:[%s1875 + $0x16a] sm:$0xff]
        %v2495 = vld [vmem:[%s1875 + $0x172] sm:$0xff]
        %v2496 = vpack.c.bf16 %v2465, %v2464
        %v2497 = vpack.c.bf16 %v2467, %v2466
        %v2498 = vpack.c.bf16 %v2469, %v2468
        %v2499 = vpack.c.bf16 %v2471, %v2470
        %v2500 = vpack.c.bf16 %v2473, %v2472
        %v2501 = vpack.c.bf16 %v2475, %v2474
        %v2502 = vpack.c.bf16 %v2477, %v2476
        %v2503 = vpack.c.bf16 %v2479, %v2478
        %v2504 = vpack.c.bf16 %v2481, %v2480
        %v2505 = vpack.c.bf16 %v2483, %v2482
        %v2506 = vpack.c.bf16 %v2485, %v2484
        %v2507 = vpack.c.bf16 %v2487, %v2486
        %v2508 = vpack.c.bf16 %v2489, %v2488
        %v2509 = vpack.c.bf16 %v2491, %v2490
        %v2510 = vpack.c.bf16 %v2493, %v2492
        %v2511 = vpack.c.bf16 %v2495, %v2494
        %s2512 = scalar_lea.vmem %s1, 16
        %v2513 = vld [vmem:[%s2512] sm:$0x3]
        %v2515 = vsel %vm269, %v2496, 0
        %v2518 = vsel %vm269, %v2497, 0
        %v2521 = vsel %vm269, %v2498, 0
        %v2524 = vsel %vm269, %v2499, 0
        %v2527 = vsel %vm269, %v2500, 0
        %v2530 = vsel %vm269, %v2501, 0
        %v2533 = vsel %vm269, %v2502, 0
        %v2536 = vsel %vm269, %v2503, 0
        %v2539 = vsel %vm269, %v2504, 0
        %v2542 = vsel %vm269, %v2505, 0
        %v2545 = vsel %vm269, %v2506, 0
        %v2548 = vsel %vm269, %v2507, 0
        %v2551 = vsel %vm269, %v2508, 0
        %v2554 = vsel %vm269, %v2509, 0
        %v2557 = vsel %vm269, %v2510, 0
        %v2560 = vsel %vm269, %v2511, 0
        %v2563 = vand.u32 %v2513, %v321
        %2565 = vmatprep.subr.bf16.mxu0 0
        %2566 = vmatpush1.bf16.msra.mxu0 %v2563
        %2567 = vmatprep.subr.bf16.mxu0 0
        %2568 = vmatpush1.bf16.msra.mxu0 0
        %2569 = vmatprep.subr.bf16.mxu0 0
        %2570 = vmatpush1.bf16.msra.mxu0 0
        %2571 = vmatprep.subr.bf16.mxu0 0
        %2572 = vmatpush1.bf16.msra.mxu0 0
        %2573 = vmatprep.subr.bf16.mxu0 0
        %2574 = vmatpush1.bf16.msra.mxu0 0
        %2575 = vmatprep.subr.bf16.mxu0 0
        %2576 = vmatpush1.bf16.msra.mxu0 0
        %2577 = vmatprep.subr.bf16.mxu0 0
        %2578 = vmatpush1.bf16.msra.mxu0 0
        %2579 = vmatprep.subr.bf16.mxu0 0
        %2580 = vmatpush1.bf16.msra.mxu0 0
        %2581 = vmatprep.subr.bf16.mxu0 0
        %2582 = vmatpush1.bf16.msra.mxu0 0
        %2583 = vmatprep.subr.bf16.mxu0 0
        %2584 = vmatpush1.bf16.msra.mxu0 0
        %2585 = vmatprep.subr.bf16.mxu0 0
        %2586 = vmatpush1.bf16.msra.mxu0 0
        %2587 = vmatprep.subr.bf16.mxu0 0
        %2588 = vmatpush1.bf16.msra.mxu0 0
        %2589 = vmatprep.subr.bf16.mxu0 0
        %2590 = vmatpush1.bf16.msra.mxu0 0
        %2591 = vmatprep.subr.bf16.mxu0 0
        %2592 = vmatpush1.bf16.msra.mxu0 0
        %2593 = vmatprep.subr.bf16.mxu0 0
        %2594 = vmatpush1.bf16.msra.mxu0 0
        %2595 = vmatprep.subr.bf16.mxu0 0
        %2596 = vmatpush1.bf16.msra.mxu0 0
        %2597 = vmatprep.mubr.bf16.mxu0 0
        %2598 = vmatmul.mubr.bf16.gmra.mrb[0].mxu0 %v2515
        %v2599 = vpop.f32.mrb[0].mxu0
        %v2600 = vadd.f32 0.0, %v2599
        %v2601 = vpop.f32.mrb[0].mxu0
        %v2602 = vpop.f32.mrb[0].mxu0
        %v2603 = vadd.f32 0.0, %v2602
        %v2604 = vpop.f32.mrb[0].mxu0
        %2605 = vmatprep.mubr.bf16.mxu0 0
        %2606 = vmatmul.mubr.bf16.gmra.mrb[0].mxu0 %v2518
        %v2607 = vpop.f32.mrb[0].mxu0
        %v2608 = vadd.f32 0.0, %v2607
        %v2609 = vpop.f32.mrb[0].mxu0
        %v2610 = vpop.f32.mrb[0].mxu0
        %v2611 = vadd.f32 0.0, %v2610
        %v2612 = vpop.f32.mrb[0].mxu0
        %2613 = vmatprep.mubr.bf16.mxu0 0
        %2614 = vmatmul.mubr.bf16.gmra.mrb[0].mxu0 %v2521
        %v2615 = vpop.f32.mrb[0].mxu0
        %v2616 = vadd.f32 0.0, %v2615
        %v2617 = vpop.f32.mrb[0].mxu0
        %v2618 = vpop.f32.mrb[0].mxu0
        %v2619 = vadd.f32 0.0, %v2618
        %v2620 = vpop.f32.mrb[0].mxu0
        %2621 = vmatprep.mubr.bf16.mxu0 0
        %2622 = vmatmul.mubr.bf16.gmra.mrb[0].mxu0 %v2524
        %v2623 = vpop.f32.mrb[0].mxu0
        %v2624 = vadd.f32 0.0, %v2623
        %v2625 = vpop.f32.mrb[0].mxu0
        %v2626 = vpop.f32.mrb[0].mxu0
        %v2627 = vadd.f32 0.0, %v2626
        %v2628 = vpop.f32.mrb[0].mxu0
        %2629 = vmatprep.mubr.bf16.mxu0 0
        %2630 = vmatmul.mubr.bf16.gmra.mrb[0].mxu0 %v2527
        %v2631 = vpop.f32.mrb[0].mxu0
        %v2632 = vadd.f32 0.0, %v2631
        %v2633 = vpop.f32.mrb[0].mxu0
        %v2634 = vpop.f32.mrb[0].mxu0
        %v2635 = vadd.f32 0.0, %v2634
        %v2636 = vpop.f32.mrb[0].mxu0
        %2637 = vmatprep.mubr.bf16.mxu0 0
        %2638 = vmatmul.mubr.bf16.gmra.mrb[0].mxu0 %v2530
        %v2639 = vpop.f32.mrb[0].mxu0
        %v2640 = vadd.f32 0.0, %v2639
        %v2641 = vpop.f32.mrb[0].mxu0
        %v2642 = vpop.f32.mrb[0].mxu0
        %v2643 = vadd.f32 0.0, %v2642
        %v2644 = vpop.f32.mrb[0].mxu0
        %2645 = vmatprep.mubr.bf16.mxu0 0
        %2646 = vmatmul.mubr.bf16.gmra.mrb[0].mxu0 %v2533
        %v2647 = vpop.f32.mrb[0].mxu0
        %v2648 = vadd.f32 0.0, %v2647
        %v2649 = vpop.f32.mrb[0].mxu0
        %v2650 = vpop.f32.mrb[0].mxu0
        %v2651 = vadd.f32 0.0, %v2650
        %v2652 = vpop.f32.mrb[0].mxu0
        %2653 = vmatprep.mubr.bf16.mxu0 0
        %2654 = vmatmul.mubr.bf16.gmra.mrb[0].mxu0 %v2536
        %v2655 = vpop.f32.mrb[0].mxu0
        %v2656 = vadd.f32 0.0, %v2655
        %v2657 = vpop.f32.mrb[0].mxu0
        %v2658 = vpop.f32.mrb[0].mxu0
        %v2659 = vadd.f32 0.0, %v2658
        %v2660 = vpop.f32.mrb[0].mxu0
        %2661 = vmatprep.mubr.bf16.mxu0 0
        %2662 = vmatmul.mubr.bf16.gmra.mrb[0].mxu0 %v2539
        %v2663 = vpop.f32.mrb[0].mxu0
        %v2664 = vadd.f32 0.0, %v2663
        %v2665 = vpop.f32.mrb[0].mxu0
        %v2666 = vpop.f32.mrb[0].mxu0
        %v2667 = vadd.f32 0.0, %v2666
        %v2668 = vpop.f32.mrb[0].mxu0
        %2669 = vmatprep.mubr.bf16.mxu0 0
        %2670 = vmatmul.mubr.bf16.gmra.mrb[0].mxu0 %v2542
        %v2671 = vpop.f32.mrb[0].mxu0
        %v2672 = vadd.f32 0.0, %v2671
        %v2673 = vpop.f32.mrb[0].mxu0
        %v2674 = vpop.f32.mrb[0].mxu0
        %v2675 = vadd.f32 0.0, %v2674
        %v2676 = vpop.f32.mrb[0].mxu0
        %2677 = vmatprep.mubr.bf16.mxu0 0
        %2678 = vmatmul.mubr.bf16.gmra.mrb[0].mxu0 %v2545
        %v2679 = vpop.f32.mrb[0].mxu0
        %v2680 = vadd.f32 0.0, %v2679
        %v2681 = vpop.f32.mrb[0].mxu0
        %v2682 = vpop.f32.mrb[0].mxu0
        %v2683 = vadd.f32 0.0, %v2682
        %v2684 = vpop.f32.mrb[0].mxu0
        %2685 = vmatprep.mubr.bf16.mxu0 0
        %2686 = vmatmul.mubr.bf16.gmra.mrb[0].mxu0 %v2548
        %v2687 = vpop.f32.mrb[0].mxu0
        %v2688 = vadd.f32 0.0, %v2687
        %v2689 = vpop.f32.mrb[0].mxu0
        %v2690 = vpop.f32.mrb[0].mxu0
        %v2691 = vadd.f32 0.0, %v2690
        %v2692 = vpop.f32.mrb[0].mxu0
        %2693 = vmatprep.mubr.bf16.mxu0 0
        %2694 = vmatmul.mubr.bf16.gmra.mrb[0].mxu0 %v2551
        %v2695 = vpop.f32.mrb[0].mxu0
        %v2696 = vadd.f32 0.0, %v2695
        %v2697 = vpop.f32.mrb[0].mxu0
        %v2698 = vpop.f32.mrb[0].mxu0
        %v2699 = vadd.f32 0.0, %v2698
        %v2700 = vpop.f32.mrb[0].mxu0
        %2701 = vmatprep.mubr.bf16.mxu0 0
        %2702 = vmatmul.mubr.bf16.gmra.mrb[0].mxu0 %v2554
        %v2703 = vpop.f32.mrb[0].mxu0
        %v2704 = vadd.f32 0.0, %v2703
        %v2705 = vpop.f32.mrb[0].mxu0
        %v2706 = vpop.f32.mrb[0].mxu0
        %v2707 = vadd.f32 0.0, %v2706
        %v2708 = vpop.f32.mrb[0].mxu0
        %2709 = vmatprep.mubr.bf16.mxu0 0
        %2710 = vmatmul.mubr.bf16.gmra.mrb[0].mxu0 %v2557
        %v2711 = vpop.f32.mrb[0].mxu0
        %v2712 = vadd.f32 0.0, %v2711
        %v2713 = vpop.f32.mrb[0].mxu0
        %v2714 = vpop.f32.mrb[0].mxu0
        %v2715 = vadd.f32 0.0, %v2714
        %v2716 = vpop.f32.mrb[0].mxu0
        %2717 = vmatprep.mubr.bf16.mxu0 0
        %2718 = vmatmul.mubr.bf16.gmra.mrb[0].mxu0 %v2560
        %v2719 = vpop.f32.mrb[0].mxu0
        %v2720 = vadd.f32 0.0, %v2719
        %v2721 = vpop.f32.mrb[0].mxu0
        %v2722 = vpop.f32.mrb[0].mxu0
        %v2723 = vadd.f32 0.0, %v2722
        %v2724 = vpop.f32.mrb[0].mxu0
        %2725 = vdwg.mxu0
        %v2726 = vadd.f32 %v2432, %v2600
        %v2727 = vadd.f32 %v2433, %v2603
        %v2728 = vadd.f32 %v2434, %v2608
        %v2729 = vadd.f32 %v2435, %v2611
        %v2730 = vadd.f32 %v2436, %v2616
        %v2731 = vadd.f32 %v2437, %v2619
        %v2732 = vadd.f32 %v2438, %v2624
        %v2733 = vadd.f32 %v2439, %v2627
        %v2734 = vadd.f32 %v2440, %v2632
        %v2735 = vadd.f32 %v2441, %v2635
        %v2736 = vadd.f32 %v2442, %v2640
        %v2737 = vadd.f32 %v2443, %v2643
        %v2738 = vadd.f32 %v2444, %v2648
        %v2739 = vadd.f32 %v2445, %v2651
        %v2740 = vadd.f32 %v2446, %v2656
        %v2741 = vadd.f32 %v2447, %v2659
        %v2742 = vadd.f32 %v2448, %v2664
        %v2743 = vadd.f32 %v2449, %v2667
        %v2744 = vadd.f32 %v2450, %v2672
        %v2745 = vadd.f32 %v2451, %v2675
        %v2746 = vadd.f32 %v2452, %v2680
        %v2747 = vadd.f32 %v2453, %v2683
        %v2748 = vadd.f32 %v2454, %v2688
        %v2749 = vadd.f32 %v2455, %v2691
        %v2750 = vadd.f32 %v2456, %v2696
        %v2751 = vadd.f32 %v2457, %v2699
        %v2752 = vadd.f32 %v2458, %v2704
        %v2753 = vadd.f32 %v2459, %v2707
        %v2754 = vadd.f32 %v2460, %v2712
        %v2755 = vadd.f32 %v2461, %v2715
        %v2756 = vadd.f32 %v2462, %v2720
        %v2757 = vadd.f32 %v2463, %v2723
        %v2758 = vld [vmem:[%s2] sm:$0x1]
        %v2760 = vlaneseq
        %v2761 = vshrl.u32 %v2760, 7
        %v2762 = vsub.s32 0, %v2761
        %v2763 = vrot.slane %v2758, %v2762
        %v2765 = vadd.f32 %v2726, %v2763
        %v2766 = vadd.f32 %v2727, %v2763
        %v2767 = vadd.f32 %v2728, %v2763
        %v2768 = vadd.f32 %v2729, %v2763
        %v2769 = vadd.f32 %v2730, %v2763
        %v2770 = vadd.f32 %v2731, %v2763
        %v2771 = vadd.f32 %v2732, %v2763
        %v2772 = vadd.f32 %v2733, %v2763
        %v2773 = vadd.f32 %v2734, %v2763
        %v2774 = vadd.f32 %v2735, %v2763
        %v2775 = vadd.f32 %v2736, %v2763
        %v2776 = vadd.f32 %v2737, %v2763
        %v2777 = vadd.f32 %v2738, %v2763
        %v2778 = vadd.f32 %v2739, %v2763
        %v2779 = vadd.f32 %v2740, %v2763
        %v2780 = vadd.f32 %v2741, %v2763
        %v2781 = vadd.f32 %v2742, %v2763
        %v2782 = vadd.f32 %v2743, %v2763
        %v2783 = vadd.f32 %v2744, %v2763
        %v2784 = vadd.f32 %v2745, %v2763
        %v2785 = vadd.f32 %v2746, %v2763
        %v2786 = vadd.f32 %v2747, %v2763
        %v2787 = vadd.f32 %v2748, %v2763
        %v2788 = vadd.f32 %v2749, %v2763
        %v2789 = vadd.f32 %v2750, %v2763
        %v2790 = vadd.f32 %v2751, %v2763
        %v2791 = vadd.f32 %v2752, %v2763
        %v2792 = vadd.f32 %v2753, %v2763
        %v2793 = vadd.f32 %v2754, %v2763
        %v2794 = vadd.f32 %v2755, %v2763
        %v2795 = vadd.f32 %v2756, %v2763
        %v2796 = vadd.f32 %v2757, %v2763
        %v2797 = vmax.f32 %v2765, 0.0
        %v2798 = vmax.f32 %v2766, 0.0
        %v2799 = vmax.f32 %v2767, 0.0
        %v2800 = vmax.f32 %v2768, 0.0
        %v2801 = vmax.f32 %v2769, 0.0
        %v2802 = vmax.f32 %v2770, 0.0
        %v2803 = vmax.f32 %v2771, 0.0
        %v2804 = vmax.f32 %v2772, 0.0
        %v2805 = vmax.f32 %v2773, 0.0
        %v2806 = vmax.f32 %v2774, 0.0
        %v2807 = vmax.f32 %v2775, 0.0
        %v2808 = vmax.f32 %v2776, 0.0
        %v2809 = vmax.f32 %v2777, 0.0
        %v2810 = vmax.f32 %v2778, 0.0
        %v2811 = vmax.f32 %v2779, 0.0
        %v2812 = vmax.f32 %v2780, 0.0
        %v2813 = vmax.f32 %v2781, 0.0
        %v2814 = vmax.f32 %v2782, 0.0
        %v2815 = vmax.f32 %v2783, 0.0
        %v2816 = vmax.f32 %v2784, 0.0
        %v2817 = vmax.f32 %v2785, 0.0
        %v2818 = vmax.f32 %v2786, 0.0
        %v2819 = vmax.f32 %v2787, 0.0
        %v2820 = vmax.f32 %v2788, 0.0
        %v2821 = vmax.f32 %v2789, 0.0
        %v2822 = vmax.f32 %v2790, 0.0
        %v2823 = vmax.f32 %v2791, 0.0
        %v2824 = vmax.f32 %v2792, 0.0
        %v2825 = vmax.f32 %v2793, 0.0
        %v2826 = vmax.f32 %v2794, 0.0
        %v2827 = vmax.f32 %v2795, 0.0
        %v2828 = vmax.f32 %v2796, 0.0
        %vm2829 = vcmask 523264
        %2830 = vst.msk [vmem:[%s163] sm:$0xff] %vm2829, %v2797
        %2831 = vst.msk [vmem:[%s163 + $0x8] sm:$0xff] %vm2829, %v2798
        %2832 = vst.msk [vmem:[%s163 + $0x10] sm:$0xff] %vm2829, %v2799
        %2833 = vst.msk [vmem:[%s163 + $0x18] sm:$0xff] %vm2829, %v2800
        %2834 = vst.msk [vmem:[%s163 + $0x20] sm:$0xff] %vm2829, %v2801
        %2835 = vst.msk [vmem:[%s163 + $0x28] sm:$0xff] %vm2829, %v2802
        %2836 = vst.msk [vmem:[%s163 + $0x30] sm:$0xff] %vm2829, %v2803
        %2837 = vst.msk [vmem:[%s163 + $0x38] sm:$0xff] %vm2829, %v2804
        %2838 = vst.msk [vmem:[%s163 + $0x40] sm:$0xff] %vm2829, %v2805
        %2839 = vst.msk [vmem:[%s163 + $0x48] sm:$0xff] %vm2829, %v2806
        %2840 = vst.msk [vmem:[%s163 + $0x50] sm:$0xff] %vm2829, %v2807
        %2841 = vst.msk [vmem:[%s163 + $0x58] sm:$0xff] %vm2829, %v2808
        %2842 = vst.msk [vmem:[%s163 + $0x60] sm:$0xff] %vm2829, %v2809
        %2843 = vst.msk [vmem:[%s163 + $0x68] sm:$0xff] %vm2829, %v2810
        %2844 = vst.msk [vmem:[%s163 + $0x70] sm:$0xff] %vm2829, %v2811
        %2845 = vst.msk [vmem:[%s163 + $0x78] sm:$0xff] %vm2829, %v2812
        %2846 = vst.msk [vmem:[%s163 + $0x80] sm:$0xff] %vm2829, %v2813
        %2847 = vst.msk [vmem:[%s163 + $0x88] sm:$0xff] %vm2829, %v2814
        %2848 = vst.msk [vmem:[%s163 + $0x90] sm:$0xff] %vm2829, %v2815
        %2849 = vst.msk [vmem:[%s163 + $0x98] sm:$0xff] %vm2829, %v2816
        %2850 = vst.msk [vmem:[%s163 + $0xa0] sm:$0xff] %vm2829, %v2817
        %2851 = vst.msk [vmem:[%s163 + $0xa8] sm:$0xff] %vm2829, %v2818
        %2852 = vst.msk [vmem:[%s163 + $0xb0] sm:$0xff] %vm2829, %v2819
        %2853 = vst.msk [vmem:[%s163 + $0xb8] sm:$0xff] %vm2829, %v2820
        %2854 = vst.msk [vmem:[%s163 + $0xc0] sm:$0xff] %vm2829, %v2821
        %2855 = vst.msk [vmem:[%s163 + $0xc8] sm:$0xff] %vm2829, %v2822
        %2856 = vst.msk [vmem:[%s163 + $0xd0] sm:$0xff] %vm2829, %v2823
        %2857 = vst.msk [vmem:[%s163 + $0xd8] sm:$0xff] %vm2829, %v2824
        %2858 = vst.msk [vmem:[%s163 + $0xe0] sm:$0xff] %vm2829, %v2825
        %2859 = vst.msk [vmem:[%s163 + $0xe8] sm:$0xff] %vm2829, %v2826
        %2860 = vst.msk [vmem:[%s163 + $0xf0] sm:$0xff] %vm2829, %v2827
        %2861 = vst.msk [vmem:[%s163 + $0xf8] sm:$0xff] %vm2829, %v2828
        %s2862 = sand.u32 %s93, 1
        %s2863 = scalar_lea.sflag [#allocation3], %s2862
        %s2864 = sand.u32 %s93, 1
        %s2865 = smul.addr %s2864, 256
        %s2866 = scalar_lea.vmem [#allocation2], %s2865
        // Predicated region
        $region33: #{tpu_custom_call.1} parent=31 // pred_check
          %p2867 = pneg %p103
        $region34: #{tpu_custom_call.1} parent=31 // pred_check_branch
          %2869 = sbr.rel (%p2867) target = $region36
        $region35: #{tpu_custom_call.1} parent=31 // pred_region
          %s2871 = ssub.s32 4096, 4096
          %2872 = vsyncadd %s2863, %s2871
          %s2873 = smul.addr %s17, 32
          %s2874 = smul.addr %s2873, 128
          %s2875 = scalar_lea.hbm %s3, %s2874
          %s2876 = sshll.u32 %s2866, 4
          %s2877 = int_to_ptr.vmem [resolvable:$true] %s2876
          %2882 = dma.vmem_to_hbm [thread:$0]  %s2877, 4096, %s2875, %s2863, 128, 128, 8
        $region36: #{tpu_custom_call.1} parent=31 // pred_fallthru
          _
      $region32: #{tpu_custom_call.1} parent=5 // pred_fallthru
        _
      %p2883 = scmp.le.s32.totalorder 2, %s12
      // Predicated region
      $region37: #{tpu_custom_call.1} parent=5 // pred_check
        %p2884 = pneg %p2883
      $region38: #{tpu_custom_call.1} parent=5 // pred_check_branch
        %2886 = sbr.rel (%p2884) target = $region40
      $region39: #{tpu_custom_call.1} parent=5 // pred_region
        %s2887 = ssub.s32 %s12, 2
        // Predicated region
        $region41: #{tpu_custom_call.1} parent=39 // pred_check
          %p2888 = pneg %p109
        $region42: #{tpu_custom_call.1} parent=39 // pred_check_branch
          %2890 = sbr.rel (%p2888) target = $region44
        $region43: #{tpu_custom_call.1} parent=39 // pred_region
          %s2891 = sand.u32 %s94, 1
          %s2892 = scalar_lea.sflag [#allocation3], %s2891
          %s2893 = sand.u32 %s94, 1
          %s2894 = smul.addr %s2893, 256
          %s2895 = scalar_lea.vmem [#allocation2], %s2894
          %2896 = dma.done %s2892, 4096
        $region44: #{tpu_custom_call.1} parent=39 // pred_fallthru
          _
      $region40: #{tpu_custom_call.1} parent=5 // pred_fallthru
        _
    $region6: #{tpu_custom_call.1} parent=1 // loop_footer
      %s16 = sadd.s32 1, %s12
    $region7: #{tpu_custom_call.1} parent=1 // loop_footer_branch
      %11 = sbr.rel target = $region3
    $region8: #{tpu_custom_call.1} parent=1 // loop_exit
      _
    %2897 = vsyncpa [#allocation3], 1
    %s2898 = scalar_lea.sflag [#allocation3], 1
    %2899 = vsyncpa %s2898, 1

</llo_original>
